<compile_context>
chip_gen: v7x
topology: tpu7x:2x2x1
jax: 0.10.0
libtpu: 0.0.40
codegen_flags: <defaults>
</compile_context>

<pallas_src>
import functools
import math

import jax
import jax.numpy as jnp
from jax.experimental import pallas as pl
from jax.experimental.pallas import tpu as pltpu


# ----------------------------- in-kernel helpers -----------------------------

def _layer_norm(x, gamma, beta, eps=1e-5):
    # PyTorch nn.LayerNorm over the last dim (biased variance), eps=1e-5.
    mean = jnp.mean(x, axis=-1, keepdims=True)
    var = jnp.mean((x - mean) ** 2, axis=-1, keepdims=True)
    return (x - mean) * jax.lax.rsqrt(var + eps) * gamma + beta


# --------------------------------- kernel ------------------------------------

def encoder_layer_kernel(x_ref, pos_ref, neg_ref,
                         fcw_ref, fcb_ref, lng_ref, lnb_ref,
                         wqkv_ref, bqkv_ref, wo_ref, bo_ref,
                         g1_ref, b1n_ref, w1_ref, b1_ref,
                         w2_ref, b2_ref, g2_ref, b2n_ref,
                         o_ref,
                         cur_ref,
                         *, h, d_k, d_v, b_block, seq):
    l = pl.program_id(1)               # layer index (innermost grid axis)
    m = b_block * seq                  # flattened matmul M dimension

    # ---- front-end: LayerNorm(relu(fc(x))); runs once per batch tile ----
    @pl.when(l == 0)
    def _():
        x = x_ref[...].reshape(m, x_ref.shape[-1]).astype(jnp.bfloat16)
        y = jnp.dot(x, fcw_ref[...], preferred_element_type=jnp.float32) + fcb_ref[...]
        y = jnp.maximum(y, 0.0)
        cur_ref[...] = _layer_norm(y, lng_ref[...], lnb_ref[...])

    # queries = keys = values = cur + pos (pos re-injected every layer, as in ref)
    d_model = pos_ref.shape[-1]
    xq = (cur_ref[...].reshape(b_block, seq, d_model)
          + pos_ref[...][None]).reshape(m, d_model)          # (M, d_model) f32
    neg = neg_ref[...]                                       # (b_block, 1, S) additive mask

    # ---- fused QKV projection: one lane-dense 2-D matmul ----
    qkv = jnp.dot(xq.astype(jnp.bfloat16), wqkv_ref[...],
                  preferred_element_type=jnp.float32) + bqkv_ref[...]
    qkv = qkv.astype(jnp.bfloat16)                           # (M, h*(2*d_k + d_v))

    hk = h * d_k
    scale = 1.0 / math.sqrt(d_k)

    # ---- scaled dot-product attention, per head (batched over the b tile) ----
    # Per-head score/context matmuls are tiny (K=d_k) -> VPU/XLU filler; the
    # real MXU work is the fused QKV / Wo / FFN dots above and below.
    ctx_heads = []
    for hh in range(h):                                      # static unroll, h is small
        q_h = qkv[:, hh * d_k:(hh + 1) * d_k].reshape(b_block, seq, d_k)
        k_h = qkv[:, hk + hh * d_k:hk + (hh + 1) * d_k].reshape(b_block, seq, d_k)
        v_h = qkv[:, 2 * hk + hh * d_v:2 * hk + (hh + 1) * d_v].reshape(b_block, seq, d_v)

        s = jnp.einsum("bqd,bkd->bqk", q_h, k_h,
                       preferred_element_type=jnp.float32) * scale   # (b, S, S)
        s = s + neg                                          # masked_fill(mask, -inf) equivalent
        s = s - jnp.max(s, axis=-1, keepdims=True)
        p = jnp.exp(s)
        p = p * pl.reciprocal(jnp.sum(p, axis=-1, keepdims=True), approx=True)

        o_h = jnp.einsum("bqk,bkd->bqd", p.astype(jnp.bfloat16), v_h,
                         preferred_element_type=jnp.float32)          # (b, S, d_v)
        ctx_heads.append(o_h.reshape(m, d_v))

    ctx = jnp.concatenate(ctx_heads, axis=-1)                # (M, h*d_v) == concat(heads)

    # ---- output projection (single K = h*d_v dot) + residual + LayerNorm ----
    mh = jnp.dot(ctx.astype(jnp.bfloat16), wo_ref[...],
                 preferred_element_type=jnp.float32) + bo_ref[...]
    res1 = _layer_norm(xq + mh, g1_ref[...], b1n_ref[...])

    # ---- position-wise feed forward + residual + LayerNorm ----
    ff = jnp.dot(res1.astype(jnp.bfloat16), w1_ref[...],
                 preferred_element_type=jnp.float32) + b1_ref[...]
    ff = jnp.maximum(ff, 0.0)
    ff = jnp.dot(ff.astype(jnp.bfloat16), w2_ref[...],
                 preferred_element_type=jnp.float32) + b2_ref[...]
    cur = _layer_norm(res1 + ff, g2_ref[...], b2n_ref[...])
    cur_ref[...] = cur

    @pl.when(l == pl.num_programs(1) - 1)
    def _():
        o_ref[...] = cur.reshape(o_ref.shape)


# ------------------------------ JAX-side glue ---------------------------------

def sinusoid_pos_embedding(S, d_model, temperature=10000.0, normalize=True):
    # SinusoidPositionalEmbedding(normalize=True) with mask=None:
    # cumsum of ones -> [1..S], normalize by last value * 2*pi, interleave sin/cos.
    embed = jnp.arange(1, S + 1, dtype=jnp.float32)
    if normalize:
        eps = 1e-6
        embed = embed / (embed[-1] + eps) * (2.0 * math.pi)
    dim_t = jnp.arange(d_model, dtype=jnp.float32)
    dim_t = temperature ** (2.0 * jnp.floor(dim_t / 2.0) / d_model)
    pos = embed[:, None] / dim_t[None, :]                      # (S, d_model)
    pos = jnp.stack([jnp.sin(pos[:, 0::2]), jnp.cos(pos[:, 1::2])], axis=2)
    return pos.reshape(S, d_model)


def init_params(key, d_in, d_model, d_k, d_v, h, d_ff, N):
    def norm(k, shape, scale=0.02):
        return jax.random.normal(k, shape, jnp.float32) * scale

    keys = iter(jax.random.split(key, 4 + N * 16))
    params = {
        "fc_w": norm(next(keys), (d_in, d_model)),
        "fc_b": norm(next(keys), (1, d_model)),
        "ln_g": jnp.ones((1, d_model), jnp.float32),
        "ln_b": jnp.zeros((1, d_model), jnp.float32),
        "layers": [],
    }
    for _ in range(N):
        lp = {
            "wq": norm(next(keys), (d_model, h * d_k)),
            "bq": norm(next(keys), (1, h * d_k)),
            "wk": norm(next(keys), (d_model, h * d_k)),
            "bk": norm(next(keys), (1, h * d_k)),
            "wv": norm(next(keys), (d_model, h * d_v)),
            "bv": norm(next(keys), (1, h * d_v)),
            "wo": norm(next(keys), (h * d_v, d_model)),
            "bo": norm(next(keys), (1, d_model)),
            "ln1_g": jnp.ones((1, d_model), jnp.float32),
            "ln1_b": jnp.zeros((1, d_model), jnp.float32),
            "w1": norm(next(keys), (d_model, d_ff)),
            "b1": norm(next(keys), (1, d_ff)),
            "w2": norm(next(keys), (d_ff, d_model)),
            "b2": norm(next(keys), (1, d_model)),
            "ln2_g": jnp.ones((1, d_model), jnp.float32),
            "ln2_b": jnp.zeros((1, d_model), jnp.float32),
        }
        params["layers"].append(lp)
    return params


def _pick_b_block(B, S):
    # Fatten matmul M (= b_block * S) toward ~256 rows, but keep >= 2 batch
    # tiles (v7x megacore) when that still leaves M >= 128.
    bb = max(1, min(B, max(1, 256 // max(S, 1))))
    while bb > 1 and B // bb < 2 and (bb // 2) * S >= 128:
        bb //= 2
    while bb > 1 and B % bb != 0:
        bb -= 1
    return bb


@functools.partial(jax.jit, static_argnames=("d_model", "d_k", "d_v", "h", "d_ff"))
def encoder_forward(features, params, *, d_model, d_k, d_v, h, d_ff):
    B, S, d_in = features.shape
    layers = params["layers"]
    N = len(layers)
    bf16 = jnp.bfloat16

    # generate_padding_mask(features, padding_idx=0): True where the feature
    # vector sums to 0 (padding position); shape (B, 1, 1, S) after unsqueezes.
    pad = jnp.sum(features, axis=-1) == 0.0                    # (B, S) bool
    padding_masks = pad[:, None, None, :]                      # (B, 1, 1, S)
    # additive attention mask: 0 for valid keys, -1e30 for padded keys
    neg_mask = jnp.where(pad, -1e30, 0.0).astype(jnp.float32)[:, None, :]   # (B, 1, S)

    pos = sinusoid_pos_embedding(S, d_model)                   # (S, d_model)

    # Per-layer weights stacked along a leading N axis.  QKV fused into one
    # lane-dense weight; Wo kept in its 2-D (h*d_v, d_model) layout.  Matmul
    # weights in bf16 (f32 accumulation in-kernel); biases / LN params in f32.
    qkv_w = h * (2 * d_k + d_v)
    Wqkv = jnp.stack([jnp.concatenate([lp["wq"], lp["wk"], lp["wv"]], axis=-1)
                      for lp in layers]).astype(bf16)                       # (N, d_model, qkv_w)
    Bqkv = jnp.stack([jnp.concatenate([lp["bq"], lp["bk"], lp["bv"]], axis=-1)
                      for lp in layers])                                    # (N, 1, qkv_w)
    Wo = jnp.stack([lp["wo"] for lp in layers]).astype(bf16)                # (N, h*d_v, d_model)
    Bo = jnp.stack([lp["bo"] for lp in layers])                             # (N, 1, d_model)
    G1 = jnp.stack([lp["ln1_g"] for lp in layers])
    B1n = jnp.stack([lp["ln1_b"] for lp in layers])
    W1 = jnp.stack([lp["w1"] for lp in layers]).astype(bf16)                # (N, d_model, d_ff)
    B1 = jnp.stack([lp["b1"] for lp in layers])                             # (N, 1, d_ff)
    W2 = jnp.stack([lp["w2"] for lp in layers]).astype(bf16)                # (N, d_ff, d_model)
    B2 = jnp.stack([lp["b2"] for lp in layers])                             # (N, 1, d_model)
    G2 = jnp.stack([lp["ln2_g"] for lp in layers])
    B2n = jnp.stack([lp["ln2_b"] for lp in layers])

    b_block = _pick_b_block(B, S)
    num_bt = B // b_block

    def const_spec(shape):
        return pl.BlockSpec(shape, lambda b, l, _n=len(shape): (0,) * _n)

    def layer_spec(shape):
        # stream one layer's block per grid step along the (inner) layer axis
        return pl.BlockSpec((None,) + shape,
                            lambda b, l, _n=len(shape): (l,) + (0,) * _n)

    kernel = functools.partial(encoder_layer_kernel, h=h, d_k=d_k, d_v=d_v,
                               b_block=b_block, seq=S)

    out = pl.pallas_call(
        kernel,
        out_shape=jax.ShapeDtypeStruct((B, S, d_model), jnp.float32),
        grid=(num_bt, N),
        in_specs=[
            pl.BlockSpec((b_block, S, d_in), lambda b, l: (b, 0, 0)),      # features
            const_spec((S, d_model)),                                      # pos embedding
            pl.BlockSpec((b_block, 1, S), lambda b, l: (b, 0, 0)),         # additive key mask
            const_spec((d_in, d_model)), const_spec((1, d_model)),         # fc W, b
            const_spec((1, d_model)), const_spec((1, d_model)),            # front LN g, b
            layer_spec((d_model, qkv_w)), layer_spec((1, qkv_w)),          # fused QKV W, b
            layer_spec((h * d_v, d_model)), layer_spec((1, d_model)),      # Wo, bo
            layer_spec((1, d_model)), layer_spec((1, d_model)),            # LN1 g, b
            layer_spec((d_model, d_ff)), layer_spec((1, d_ff)),            # FFN W1, b1
            layer_spec((d_ff, d_model)), layer_spec((1, d_model)),         # FFN W2, b2
            layer_spec((1, d_model)), layer_spec((1, d_model)),            # LN2 g, b
        ],
        out_specs=pl.BlockSpec((b_block, S, d_model), lambda b, l: (b, 0, 0)),
        scratch_shapes=[pltpu.VMEM((b_block * S, d_model), jnp.float32)],  # layer carry
        compiler_params=pltpu.CompilerParams(
            dimension_semantics=("parallel", "arbitrary"),
            vmem_limit_bytes=48 * 1024 * 1024),
    )(features, pos, neg_mask,
      params["fc_w"].astype(bf16), params["fc_b"], params["ln_g"], params["ln_b"],
      Wqkv, Bqkv, Wo, Bo, G1, B1n, W1, B1, W2, B2, G2, B2n)

    pos_embedding = jnp.broadcast_to(pos[None], (B, S, d_model))
    return out, padding_masks, pos_embedding


# ----------------------------------- main --------------------------------------

if __name__ == "__main__":
    # small shapes consistent with the module
    B, S = 2, 8
    d_in, d_model = 32, 64
    d_k = d_v = 16
    h = 4
    d_ff = 128
    N = 2

    key = jax.random.PRNGKey(0)
    kx, kp = jax.random.split(key)

    features = jax.random.normal(kx, (B, S, d_in), dtype=jnp.float32)
    # make the last 2 positions of batch element 1 padding (all-zero features)
    features = features.at[1, -2:, :].set(0.0)

    params = init_params(kp, d_in, d_model, d_k, d_v, h, d_ff, N)

    out, padding_masks, pos_embedding = encoder_forward(
        features, params, d_model=d_model, d_k=d_k, d_v=d_v, h=h, d_ff=d_ff)

    jax.block_until_ready((out, padding_masks, pos_embedding))

    assert out.shape == (B, S, d_model)
    assert padding_masks.shape == (B, 1, 1, S)
    assert pos_embedding.shape == (B, S, d_model)
    assert bool(jnp.all(jnp.isfinite(out)))

    # TODO(synk): dropout (p=0.1) is identity at inference and is intentionally omitted.
    print("KERNEL_OK")
</pallas_src>

<mosaic_0001>
module attributes {stable_mosaic.version = 11 : i64} {
  func.func @encoder_layer_kernel(%arg0: i32, %arg1: i32, %arg2: memref<2x8x32xf32, #tpu.memory_space<vmem>>, %arg3: memref<8x64xf32, #tpu.memory_space<vmem>>, %arg4: memref<2x1x8xf32, #tpu.memory_space<vmem>>, %arg5: memref<32x64xbf16, #tpu.memory_space<vmem>>, %arg6: memref<1x64xf32, #tpu.memory_space<vmem>>, %arg7: memref<1x64xf32, #tpu.memory_space<vmem>>, %arg8: memref<1x64xf32, #tpu.memory_space<vmem>>, %arg9: memref<1x64x192xbf16, #tpu.memory_space<vmem>>, %arg10: memref<1x1x192xf32, #tpu.memory_space<vmem>>, %arg11: memref<1x64x64xbf16, #tpu.memory_space<vmem>>, %arg12: memref<1x1x64xf32, #tpu.memory_space<vmem>>, %arg13: memref<1x1x64xf32, #tpu.memory_space<vmem>>, %arg14: memref<1x1x64xf32, #tpu.memory_space<vmem>>, %arg15: memref<1x64x128xbf16, #tpu.memory_space<vmem>>, %arg16: memref<1x1x128xf32, #tpu.memory_space<vmem>>, %arg17: memref<1x128x64xbf16, #tpu.memory_space<vmem>>, %arg18: memref<1x1x64xf32, #tpu.memory_space<vmem>>, %arg19: memref<1x1x64xf32, #tpu.memory_space<vmem>>, %arg20: memref<1x1x64xf32, #tpu.memory_space<vmem>>, %arg21: memref<2x8x64xf32, #tpu.memory_space<vmem>>, %arg22: memref<16x64xf32, #tpu.memory_space<vmem>>) attributes {dimension_semantics = [#tpu.dimension_semantics<parallel>, #tpu.dimension_semantics<arbitrary>], iteration_bounds = array<i64: 1, 2>, scalar_prefetch = 0 : i64, scratch_operands = 1 : i64, tpu.core_type = #tpu.core_type<tc>, window_params = [{transform_indices = @transform_0, window_bounds = array<i64: 2, 8, 32>}, {pipeline_mode = #tpu.pipeline_mode<synchronous>, transform_indices = @transform_1, window_bounds = array<i64: 8, 64>}, {transform_indices = @transform_2, window_bounds = array<i64: 2, 1, 8>}, {pipeline_mode = #tpu.pipeline_mode<synchronous>, transform_indices = @transform_3, window_bounds = array<i64: 32, 64>}, {pipeline_mode = #tpu.pipeline_mode<synchronous>, transform_indices = @transform_4, window_bounds = array<i64: 1, 64>}, {pipeline_mode = #tpu.pipeline_mode<synchronous>, transform_indices = @transform_5, window_bounds = array<i64: 1, 64>}, {pipeline_mode = #tpu.pipeline_mode<synchronous>, transform_indices = @transform_6, window_bounds = array<i64: 1, 64>}, {transform_indices = @transform_7, window_bounds = array<i64: 1, 64, 192>}, {transform_indices = @transform_8, window_bounds = array<i64: 1, 1, 192>}, {transform_indices = @transform_9, window_bounds = array<i64: 1, 64, 64>}, {transform_indices = @transform_10, window_bounds = array<i64: 1, 1, 64>}, {transform_indices = @transform_11, window_bounds = array<i64: 1, 1, 64>}, {transform_indices = @transform_12, window_bounds = array<i64: 1, 1, 64>}, {transform_indices = @transform_13, window_bounds = array<i64: 1, 64, 128>}, {transform_indices = @transform_14, window_bounds = array<i64: 1, 1, 128>}, {transform_indices = @transform_15, window_bounds = array<i64: 1, 128, 64>}, {transform_indices = @transform_16, window_bounds = array<i64: 1, 1, 64>}, {transform_indices = @transform_17, window_bounds = array<i64: 1, 1, 64>}, {transform_indices = @transform_18, window_bounds = array<i64: 1, 1, 64>}, {transform_indices = @transform_19, window_bounds = array<i64: 2, 8, 64>}]} {
    %c0_i32 = arith.constant 0 : i32
    %0 = arith.cmpi eq, %arg1, %c0_i32 : i32
    %1 = arith.extui %0 : i1 to i32
    %c0_i32_0 = arith.constant 0 : i32
    %2 = arith.cmpi ne, %1, %c0_i32_0 : i32
    scf.if %2 {
      %c0_80 = arith.constant 0 : index
      %c0_81 = arith.constant 0 : index
      %c0_82 = arith.constant 0 : index
      %201 = vector.load %arg2[%c0_80, %c0_81, %c0_82] : memref<2x8x32xf32, #tpu.memory_space<vmem>>, vector<2x8x32xf32>
      %202 = vector.shape_cast %201 : vector<2x8x32xf32> to vector<16x32xf32>
      %203 = arith.truncf %202 : vector<16x32xf32> to vector<16x32xbf16>
      %c0_83 = arith.constant 0 : index
      %c0_84 = arith.constant 0 : index
      %204 = vector.load %arg5[%c0_83, %c0_84] : memref<32x64xbf16, #tpu.memory_space<vmem>>, vector<32x64xbf16>
      %cst_85 = arith.constant dense<0.000000e+00> : vector<16x64xf32>
      %205 = tpu.matmul %203, %204, %cst_85 {dimension_numbers = #tpu.dot_dimension_numbers<[1], [0], [0], [1], [0, 0, 1, 1], [], []>} : vector<16x32xbf16>, vector<32x64xbf16>, vector<16x64xf32> -> vector<16x64xf32>
      %c0_86 = arith.constant 0 : index
      %c0_87 = arith.constant 0 : index
      %206 = vector.load %arg6[%c0_86, %c0_87] : memref<1x64xf32, #tpu.memory_space<vmem>>, vector<1x64xf32>
      %207 = vector.broadcast %206 : vector<1x64xf32> to vector<16x64xf32>
      %208 = arith.addf %205, %207 : vector<16x64xf32>
      %cst_88 = arith.constant 0.000000e+00 : f32
      %209 = vector.broadcast %cst_88 : f32 to vector<16x64xf32>
      %210 = arith.maximumf %208, %209 : vector<16x64xf32>
      %c0_89 = arith.constant 0 : index
      %c0_90 = arith.constant 0 : index
      %211 = vector.load %arg7[%c0_89, %c0_90] : memref<1x64xf32, #tpu.memory_space<vmem>>, vector<1x64xf32>
      %c0_91 = arith.constant 0 : index
      %c0_92 = arith.constant 0 : index
      %212 = vector.load %arg8[%c0_91, %c0_92] : memref<1x64xf32, #tpu.memory_space<vmem>>, vector<1x64xf32>
      %cst_93 = arith.constant dense<0.000000e+00> : vector<16xf32>
      %213 = vector.multi_reduction <add>, %210, %cst_93 [1] : vector<16x64xf32> to vector<16xf32>
      %214 = vector.shape_cast %213 : vector<16xf32> to vector<16x1xf32>
      %cst_94 = arith.constant 6.400000e+01 : f32
      %215 = vector.broadcast %cst_94 : f32 to vector<16x1xf32>
      %216 = arith.divf %214, %215 : vector<16x1xf32>
      %217 = vector.broadcast %216 : vector<16x1xf32> to vector<16x64xf32>
      %218 = arith.subf %210, %217 : vector<16x64xf32>
      %219 = arith.mulf %218, %218 : vector<16x64xf32>
      %cst_95 = arith.constant dense<0.000000e+00> : vector<16xf32>
      %220 = vector.multi_reduction <add>, %219, %cst_95 [1] : vector<16x64xf32> to vector<16xf32>
      %221 = vector.shape_cast %220 : vector<16xf32> to vector<16x1xf32>
      %cst_96 = arith.constant 6.400000e+01 : f32
      %222 = vector.broadcast %cst_96 : f32 to vector<16x1xf32>
      %223 = arith.divf %221, %222 : vector<16x1xf32>
      %224 = vector.broadcast %216 : vector<16x1xf32> to vector<16x64xf32>
      %225 = arith.subf %210, %224 : vector<16x64xf32>
      %cst_97 = arith.constant 9.99999974E-6 : f32
      %226 = vector.broadcast %cst_97 : f32 to vector<16x1xf32>
      %227 = arith.addf %223, %226 : vector<16x1xf32>
      %228 = math.rsqrt %227 : vector<16x1xf32>
      %229 = vector.broadcast %228 : vector<16x1xf32> to vector<16x64xf32>
      %230 = arith.mulf %225, %229 : vector<16x64xf32>
      %231 = vector.broadcast %211 : vector<1x64xf32> to vector<16x64xf32>
      %232 = arith.mulf %230, %231 : vector<16x64xf32>
      %233 = vector.broadcast %212 : vector<1x64xf32> to vector<16x64xf32>
      %234 = arith.addf %232, %233 : vector<16x64xf32>
      %c0_98 = arith.constant 0 : index
      %c0_99 = arith.constant 0 : index
      %235 = vector.load %arg22[%c0_98, %c0_99] : memref<16x64xf32, #tpu.memory_space<vmem>>, vector<16x64xf32>
      tpu.vector_store %arg22[%c0_98, %c0_99], %234 {strides = array<i32>} : memref<16x64xf32, #tpu.memory_space<vmem>>, vector<16x64xf32>,
    } else {
    }
    %c0 = arith.constant 0 : index
    %c0_1 = arith.constant 0 : index
    %3 = vector.load %arg22[%c0, %c0_1] : memref<16x64xf32, #tpu.memory_space<vmem>>, vector<16x64xf32>
    %4 = vector.shape_cast %3 : vector<16x64xf32> to vector<2x8x64xf32>
    %c0_2 = arith.constant 0 : index
    %c0_3 = arith.constant 0 : index
    %5 = vector.load %arg3[%c0_2, %c0_3] : memref<8x64xf32, #tpu.memory_space<vmem>>, vector<8x64xf32>
    %6 = vector.shape_cast %5 : vector<8x64xf32> to vector<1x8x64xf32>
    %7 = vector.broadcast %6 : vector<1x8x64xf32> to vector<2x8x64xf32>
    %8 = arith.addf %4, %7 : vector<2x8x64xf32>
    %9 = vector.shape_cast %8 : vector<2x8x64xf32> to vector<16x64xf32>
    %c0_4 = arith.constant 0 : index
    %c0_5 = arith.constant 0 : index
    %c0_6 = arith.constant 0 : index
    %10 = vector.load %arg4[%c0_4, %c0_5, %c0_6] : memref<2x1x8xf32, #tpu.memory_space<vmem>>, vector<2x1x8xf32>
    %11 = arith.truncf %9 : vector<16x64xf32> to vector<16x64xbf16>
    %c0_7 = arith.constant 0 : index
    %c0_8 = arith.constant 0 : index
    %c0_9 = arith.constant 0 : index
    %12 = vector.load %arg9[%c0_7, %c0_8, %c0_9] : memref<1x64x192xbf16, #tpu.memory_space<vmem>>, vector<1x64x192xbf16>
    %13 = vector.shape_cast %12 : vector<1x64x192xbf16> to vector<64x192xbf16>
    %cst = arith.constant dense<0.000000e+00> : vector<16x192xf32>
    %14 = tpu.matmul %11, %13, %cst {dimension_numbers = #tpu.dot_dimension_numbers<[1], [0], [0], [1], [0, 0, 1, 1], [], []>} : vector<16x64xbf16>, vector<64x192xbf16>, vector<16x192xf32> -> vector<16x192xf32>
    %c0_10 = arith.constant 0 : index
    %c0_11 = arith.constant 0 : index
    %c0_12 = arith.constant 0 : index
    %15 = vector.load %arg10[%c0_10, %c0_11, %c0_12] : memref<1x1x192xf32, #tpu.memory_space<vmem>>, vector<1x1x192xf32>
    %16 = vector.shape_cast %15 : vector<1x1x192xf32> to vector<1x192xf32>
    %17 = vector.broadcast %16 : vector<1x192xf32> to vector<16x192xf32>
    %18 = arith.addf %14, %17 : vector<16x192xf32>
    %19 = arith.truncf %18 : vector<16x192xf32> to vector<16x192xbf16>
    %20 = vector.extract_strided_slice %19 {offsets = [0, 0], sizes = [16, 16], strides = [1, 1]} : vector<16x192xbf16> to vector<16x16xbf16>
    %21 = vector.shape_cast %20 : vector<16x16xbf16> to vector<2x8x16xbf16>
    %22 = vector.extract_strided_slice %19 {offsets = [0, 64], sizes = [16, 16], strides = [1, 1]} : vector<16x192xbf16> to vector<16x16xbf16>
    %23 = vector.shape_cast %22 : vector<16x16xbf16> to vector<2x8x16xbf16>
    %24 = vector.extract_strided_slice %19 {offsets = [0, 128], sizes = [16, 16], strides = [1, 1]} : vector<16x192xbf16> to vector<16x16xbf16>
    %25 = vector.shape_cast %24 : vector<16x16xbf16> to vector<2x8x16xbf16>
    "tpu.trace_start"() <{level = 10 : i32, message = "bqd,bkd->bqk"}> : () -> ()
    %cst_13 = arith.constant dense<0.000000e+00> : vector<2x8x8xf32>
    %26 = tpu.matmul %21, %23, %cst_13 {dimension_numbers = #tpu.dot_dimension_numbers<[2], [2], [1], [1], [0, 0, 0, 1, 1, 1], [0], [0]>} : vector<2x8x16xbf16>, vector<2x8x16xbf16>, vector<2x8x8xf32> -> vector<2x8x8xf32>
    "tpu.trace_stop"() : () -> ()
    %cst_14 = arith.constant 2.500000e-01 : f32
    %27 = vector.broadcast %cst_14 : f32 to vector<2x8x8xf32>
    %28 = arith.mulf %26, %27 : vector<2x8x8xf32>
    %29 = vector.broadcast %10 : vector<2x1x8xf32> to vector<2x8x8xf32>
    %30 = arith.addf %28, %29 : vector<2x8x8xf32>
    %cst_15 = arith.constant dense<0xFF800000> : vector<2x8xf32>
    %31 = vector.multi_reduction <maximumf>, %30, %cst_15 [2] : vector<2x8x8xf32> to vector<2x8xf32>
    %32 = vector.shape_cast %31 : vector<2x8xf32> to vector<2x8x1xf32>
    %33 = vector.broadcast %32 : vector<2x8x1xf32> to vector<2x8x8xf32>
    %34 = arith.subf %30, %33 : vector<2x8x8xf32>
    %35 = math.exp %34 : vector<2x8x8xf32>
    %cst_16 = arith.constant dense<0.000000e+00> : vector<2x8xf32>
    %36 = vector.multi_reduction <add>, %35, %cst_16 [2] : vector<2x8x8xf32> to vector<2x8xf32>
    %37 = vector.shape_cast %36 : vector<2x8xf32> to vector<2x8x1xf32>
    %38 = tpu.reciprocal %37 {approx = true} : vector<2x8x1xf32> -> vector<2x8x1xf32>
    %39 = vector.broadcast %38 : vector<2x8x1xf32> to vector<2x8x8xf32>
    %40 = arith.mulf %35, %39 : vector<2x8x8xf32>
    %41 = arith.truncf %40 : vector<2x8x8xf32> to vector<2x8x8xbf16>
    "tpu.trace_start"() <{level = 10 : i32, message = "bqk,bkd->bqd"}> : () -> ()
    %cst_17 = arith.constant dense<0.000000e+00> : vector<2x8x16xf32>
    %42 = tpu.matmul %41, %25, %cst_17 {dimension_numbers = #tpu.dot_dimension_numbers<[2], [1], [1], [2], [0, 0, 0, 1, 1, 2], [0], [0]>} : vector<2x8x8xbf16>, vector<2x8x16xbf16>, vector<2x8x16xf32> -> vector<2x8x16xf32>
    "tpu.trace_stop"() : () -> ()
    %43 = vector.shape_cast %42 : vector<2x8x16xf32> to vector<16x16xf32>
    %44 = vector.extract_strided_slice %19 {offsets = [0, 16], sizes = [16, 16], strides = [1, 1]} : vector<16x192xbf16> to vector<16x16xbf16>
    %45 = vector.shape_cast %44 : vector<16x16xbf16> to vector<2x8x16xbf16>
    %46 = vector.extract_strided_slice %19 {offsets = [0, 80], sizes = [16, 16], strides = [1, 1]} : vector<16x192xbf16> to vector<16x16xbf16>
    %47 = vector.shape_cast %46 : vector<16x16xbf16> to vector<2x8x16xbf16>
    %48 = vector.extract_strided_slice %19 {offsets = [0, 144], sizes = [16, 16], strides = [1, 1]} : vector<16x192xbf16> to vector<16x16xbf16>
    %49 = vector.shape_cast %48 : vector<16x16xbf16> to vector<2x8x16xbf16>
    "tpu.trace_start"() <{level = 10 : i32, message = "bqd,bkd->bqk"}> : () -> ()
    %cst_18 = arith.constant dense<0.000000e+00> : vector<2x8x8xf32>
    %50 = tpu.matmul %45, %47, %cst_18 {dimension_numbers = #tpu.dot_dimension_numbers<[2], [2], [1], [1], [0, 0, 0, 1, 1, 1], [0], [0]>} : vector<2x8x16xbf16>, vector<2x8x16xbf16>, vector<2x8x8xf32> -> vector<2x8x8xf32>
    "tpu.trace_stop"() : () -> ()
    %cst_19 = arith.constant 2.500000e-01 : f32
    %51 = vector.broadcast %cst_19 : f32 to vector<2x8x8xf32>
    %52 = arith.mulf %50, %51 : vector<2x8x8xf32>
    %53 = vector.broadcast %10 : vector<2x1x8xf32> to vector<2x8x8xf32>
    %54 = arith.addf %52, %53 : vector<2x8x8xf32>
    %cst_20 = arith.constant dense<0xFF800000> : vector<2x8xf32>
    %55 = vector.multi_reduction <maximumf>, %54, %cst_20 [2] : vector<2x8x8xf32> to vector<2x8xf32>
    %56 = vector.shape_cast %55 : vector<2x8xf32> to vector<2x8x1xf32>
    %57 = vector.broadcast %56 : vector<2x8x1xf32> to vector<2x8x8xf32>
    %58 = arith.subf %54, %57 : vector<2x8x8xf32>
    %59 = math.exp %58 : vector<2x8x8xf32>
    %cst_21 = arith.constant dense<0.000000e+00> : vector<2x8xf32>
    %60 = vector.multi_reduction <add>, %59, %cst_21 [2] : vector<2x8x8xf32> to vector<2x8xf32>
    %61 = vector.shape_cast %60 : vector<2x8xf32> to vector<2x8x1xf32>
    %62 = tpu.reciprocal %61 {approx = true} : vector<2x8x1xf32> -> vector<2x8x1xf32>
    %63 = vector.broadcast %62 : vector<2x8x1xf32> to vector<2x8x8xf32>
    %64 = arith.mulf %59, %63 : vector<2x8x8xf32>
    %65 = arith.truncf %64 : vector<2x8x8xf32> to vector<2x8x8xbf16>
    "tpu.trace_start"() <{level = 10 : i32, message = "bqk,bkd->bqd"}> : () -> ()
    %cst_22 = arith.constant dense<0.000000e+00> : vector<2x8x16xf32>
    %66 = tpu.matmul %65, %49, %cst_22 {dimension_numbers = #tpu.dot_dimension_numbers<[2], [1], [1], [2], [0, 0, 0, 1, 1, 2], [0], [0]>} : vector<2x8x8xbf16>, vector<2x8x16xbf16>, vector<2x8x16xf32> -> vector<2x8x16xf32>
    "tpu.trace_stop"() : () -> ()
    %67 = vector.shape_cast %66 : vector<2x8x16xf32> to vector<16x16xf32>
    %68 = vector.extract_strided_slice %19 {offsets = [0, 32], sizes = [16, 16], strides = [1, 1]} : vector<16x192xbf16> to vector<16x16xbf16>
    %69 = vector.shape_cast %68 : vector<16x16xbf16> to vector<2x8x16xbf16>
    %70 = vector.extract_strided_slice %19 {offsets = [0, 96], sizes = [16, 16], strides = [1, 1]} : vector<16x192xbf16> to vector<16x16xbf16>
    %71 = vector.shape_cast %70 : vector<16x16xbf16> to vector<2x8x16xbf16>
    %72 = vector.extract_strided_slice %19 {offsets = [0, 160], sizes = [16, 16], strides = [1, 1]} : vector<16x192xbf16> to vector<16x16xbf16>
    %73 = vector.shape_cast %72 : vector<16x16xbf16> to vector<2x8x16xbf16>
    "tpu.trace_start"() <{level = 10 : i32, message = "bqd,bkd->bqk"}> : () -> ()
    %cst_23 = arith.constant dense<0.000000e+00> : vector<2x8x8xf32>
    %74 = tpu.matmul %69, %71, %cst_23 {dimension_numbers = #tpu.dot_dimension_numbers<[2], [2], [1], [1], [0, 0, 0, 1, 1, 1], [0], [0]>} : vector<2x8x16xbf16>, vector<2x8x16xbf16>, vector<2x8x8xf32> -> vector<2x8x8xf32>
    "tpu.trace_stop"() : () -> ()
    %cst_24 = arith.constant 2.500000e-01 : f32
    %75 = vector.broadcast %cst_24 : f32 to vector<2x8x8xf32>
    %76 = arith.mulf %74, %75 : vector<2x8x8xf32>
    %77 = vector.broadcast %10 : vector<2x1x8xf32> to vector<2x8x8xf32>
    %78 = arith.addf %76, %77 : vector<2x8x8xf32>
    %cst_25 = arith.constant dense<0xFF800000> : vector<2x8xf32>
    %79 = vector.multi_reduction <maximumf>, %78, %cst_25 [2] : vector<2x8x8xf32> to vector<2x8xf32>
    %80 = vector.shape_cast %79 : vector<2x8xf32> to vector<2x8x1xf32>
    %81 = vector.broadcast %80 : vector<2x8x1xf32> to vector<2x8x8xf32>
    %82 = arith.subf %78, %81 : vector<2x8x8xf32>
    %83 = math.exp %82 : vector<2x8x8xf32>
    %cst_26 = arith.constant dense<0.000000e+00> : vector<2x8xf32>
    %84 = vector.multi_reduction <add>, %83, %cst_26 [2] : vector<2x8x8xf32> to vector<2x8xf32>
    %85 = vector.shape_cast %84 : vector<2x8xf32> to vector<2x8x1xf32>
    %86 = tpu.reciprocal %85 {approx = true} : vector<2x8x1xf32> -> vector<2x8x1xf32>
    %87 = vector.broadcast %86 : vector<2x8x1xf32> to vector<2x8x8xf32>
    %88 = arith.mulf %83, %87 : vector<2x8x8xf32>
    %89 = arith.truncf %88 : vector<2x8x8xf32> to vector<2x8x8xbf16>
    "tpu.trace_start"() <{level = 10 : i32, message = "bqk,bkd->bqd"}> : () -> ()
    %cst_27 = arith.constant dense<0.000000e+00> : vector<2x8x16xf32>
    %90 = tpu.matmul %89, %73, %cst_27 {dimension_numbers = #tpu.dot_dimension_numbers<[2], [1], [1], [2], [0, 0, 0, 1, 1, 2], [0], [0]>} : vector<2x8x8xbf16>, vector<2x8x16xbf16>, vector<2x8x16xf32> -> vector<2x8x16xf32>
    "tpu.trace_stop"() : () -> ()
    %91 = vector.shape_cast %90 : vector<2x8x16xf32> to vector<16x16xf32>
    %92 = vector.extract_strided_slice %19 {offsets = [0, 48], sizes = [16, 16], strides = [1, 1]} : vector<16x192xbf16> to vector<16x16xbf16>
    %93 = vector.shape_cast %92 : vector<16x16xbf16> to vector<2x8x16xbf16>
    %94 = vector.extract_strided_slice %19 {offsets = [0, 112], sizes = [16, 16], strides = [1, 1]} : vector<16x192xbf16> to vector<16x16xbf16>
    %95 = vector.shape_cast %94 : vector<16x16xbf16> to vector<2x8x16xbf16>
    %96 = vector.extract_strided_slice %19 {offsets = [0, 176], sizes = [16, 16], strides = [1, 1]} : vector<16x192xbf16> to vector<16x16xbf16>
    %97 = vector.shape_cast %96 : vector<16x16xbf16> to vector<2x8x16xbf16>
    "tpu.trace_start"() <{level = 10 : i32, message = "bqd,bkd->bqk"}> : () -> ()
    %cst_28 = arith.constant dense<0.000000e+00> : vector<2x8x8xf32>
    %98 = tpu.matmul %93, %95, %cst_28 {dimension_numbers = #tpu.dot_dimension_numbers<[2], [2], [1], [1], [0, 0, 0, 1, 1, 1], [0], [0]>} : vector<2x8x16xbf16>, vector<2x8x16xbf16>, vector<2x8x8xf32> -> vector<2x8x8xf32>
    "tpu.trace_stop"() : () -> ()
    %cst_29 = arith.constant 2.500000e-01 : f32
    %99 = vector.broadcast %cst_29 : f32 to vector<2x8x8xf32>
    %100 = arith.mulf %98, %99 : vector<2x8x8xf32>
    %101 = vector.broadcast %10 : vector<2x1x8xf32> to vector<2x8x8xf32>
    %102 = arith.addf %100, %101 : vector<2x8x8xf32>
    %cst_30 = arith.constant dense<0xFF800000> : vector<2x8xf32>
    %103 = vector.multi_reduction <maximumf>, %102, %cst_30 [2] : vector<2x8x8xf32> to vector<2x8xf32>
    %104 = vector.shape_cast %103 : vector<2x8xf32> to vector<2x8x1xf32>
    %105 = vector.broadcast %104 : vector<2x8x1xf32> to vector<2x8x8xf32>
    %106 = arith.subf %102, %105 : vector<2x8x8xf32>
    %107 = math.exp %106 : vector<2x8x8xf32>
    %cst_31 = arith.constant dense<0.000000e+00> : vector<2x8xf32>
    %108 = vector.multi_reduction <add>, %107, %cst_31 [2] : vector<2x8x8xf32> to vector<2x8xf32>
    %109 = vector.shape_cast %108 : vector<2x8xf32> to vector<2x8x1xf32>
    %110 = tpu.reciprocal %109 {approx = true} : vector<2x8x1xf32> -> vector<2x8x1xf32>
    %111 = vector.broadcast %110 : vector<2x8x1xf32> to vector<2x8x8xf32>
    %112 = arith.mulf %107, %111 : vector<2x8x8xf32>
    %113 = arith.truncf %112 : vector<2x8x8xf32> to vector<2x8x8xbf16>
    "tpu.trace_start"() <{level = 10 : i32, message = "bqk,bkd->bqd"}> : () -> ()
    %cst_32 = arith.constant dense<0.000000e+00> : vector<2x8x16xf32>
    %114 = tpu.matmul %113, %97, %cst_32 {dimension_numbers = #tpu.dot_dimension_numbers<[2], [1], [1], [2], [0, 0, 0, 1, 1, 2], [0], [0]>} : vector<2x8x8xbf16>, vector<2x8x16xbf16>, vector<2x8x16xf32> -> vector<2x8x16xf32>
    "tpu.trace_stop"() : () -> ()
    %115 = vector.shape_cast %114 : vector<2x8x16xf32> to vector<16x16xf32>
    %116 = tpu.concatenate %43, %67, %91, %115 in 1 : vector<16x16xf32>, vector<16x16xf32>, vector<16x16xf32>, vector<16x16xf32> -> vector<16x64xf32>
    %117 = arith.truncf %116 : vector<16x64xf32> to vector<16x64xbf16>
    %c0_33 = arith.constant 0 : index
    %c0_34 = arith.constant 0 : index
    %c0_35 = arith.constant 0 : index
    %118 = vector.load %arg11[%c0_33, %c0_34, %c0_35] : memref<1x64x64xbf16, #tpu.memory_space<vmem>>, vector<1x64x64xbf16>
    %119 = vector.shape_cast %118 : vector<1x64x64xbf16> to vector<64x64xbf16>
    %cst_36 = arith.constant dense<0.000000e+00> : vector<16x64xf32>
    %120 = tpu.matmul %117, %119, %cst_36 {dimension_numbers = #tpu.dot_dimension_numbers<[1], [0], [0], [1], [0, 0, 1, 1], [], []>} : vector<16x64xbf16>, vector<64x64xbf16>, vector<16x64xf32> -> vector<16x64xf32>
    %c0_37 = arith.constant 0 : index
    %c0_38 = arith.constant 0 : index
    %c0_39 = arith.constant 0 : index
    %121 = vector.load %arg12[%c0_37, %c0_38, %c0_39] : memref<1x1x64xf32, #tpu.memory_space<vmem>>, vector<1x1x64xf32>
    %122 = vector.shape_cast %121 : vector<1x1x64xf32> to vector<1x64xf32>
    %123 = vector.broadcast %122 : vector<1x64xf32> to vector<16x64xf32>
    %124 = arith.addf %120, %123 : vector<16x64xf32>
    %125 = arith.addf %9, %124 : vector<16x64xf32>
    %c0_40 = arith.constant 0 : index
    %c0_41 = arith.constant 0 : index
    %c0_42 = arith.constant 0 : index
    %126 = vector.load %arg13[%c0_40, %c0_41, %c0_42] : memref<1x1x64xf32, #tpu.memory_space<vmem>>, vector<1x1x64xf32>
    %127 = vector.shape_cast %126 : vector<1x1x64xf32> to vector<1x64xf32>
    %c0_43 = arith.constant 0 : index
    %c0_44 = arith.constant 0 : index
    %c0_45 = arith.constant 0 : index
    %128 = vector.load %arg14[%c0_43, %c0_44, %c0_45] : memref<1x1x64xf32, #tpu.memory_space<vmem>>, vector<1x1x64xf32>
    %129 = vector.shape_cast %128 : vector<1x1x64xf32> to vector<1x64xf32>
    %cst_46 = arith.constant dense<0.000000e+00> : vector<16xf32>
    %130 = vector.multi_reduction <add>, %125, %cst_46 [1] : vector<16x64xf32> to vector<16xf32>
    %131 = vector.shape_cast %130 : vector<16xf32> to vector<16x1xf32>
    %cst_47 = arith.constant 6.400000e+01 : f32
    %132 = vector.broadcast %cst_47 : f32 to vector<16x1xf32>
    %133 = arith.divf %131, %132 : vector<16x1xf32>
    %134 = vector.broadcast %133 : vector<16x1xf32> to vector<16x64xf32>
    %135 = arith.subf %125, %134 : vector<16x64xf32>
    %136 = arith.mulf %135, %135 : vector<16x64xf32>
    %cst_48 = arith.constant dense<0.000000e+00> : vector<16xf32>
    %137 = vector.multi_reduction <add>, %136, %cst_48 [1] : vector<16x64xf32> to vector<16xf32>
    %138 = vector.shape_cast %137 : vector<16xf32> to vector<16x1xf32>
    %cst_49 = arith.constant 6.400000e+01 : f32
    %139 = vector.broadcast %cst_49 : f32 to vector<16x1xf32>
    %140 = arith.divf %138, %139 : vector<16x1xf32>
    %141 = vector.broadcast %133 : vector<16x1xf32> to vector<16x64xf32>
    %142 = arith.subf %125, %141 : vector<16x64xf32>
    %cst_50 = arith.constant 9.99999974E-6 : f32
    %143 = vector.broadcast %cst_50 : f32 to vector<16x1xf32>
    %144 = arith.addf %140, %143 : vector<16x1xf32>
    %145 = math.rsqrt %144 : vector<16x1xf32>
    %146 = vector.broadcast %145 : vector<16x1xf32> to vector<16x64xf32>
    %147 = arith.mulf %142, %146 : vector<16x64xf32>
    %148 = vector.broadcast %127 : vector<1x64xf32> to vector<16x64xf32>
    %149 = arith.mulf %147, %148 : vector<16x64xf32>
    %150 = vector.broadcast %129 : vector<1x64xf32> to vector<16x64xf32>
    %151 = arith.addf %149, %150 : vector<16x64xf32>
    %152 = arith.truncf %151 : vector<16x64xf32> to vector<16x64xbf16>
    %c0_51 = arith.constant 0 : index
    %c0_52 = arith.constant 0 : index
    %c0_53 = arith.constant 0 : index
    %153 = vector.load %arg15[%c0_51, %c0_52, %c0_53] : memref<1x64x128xbf16, #tpu.memory_space<vmem>>, vector<1x64x128xbf16>
    %154 = vector.shape_cast %153 : vector<1x64x128xbf16> to vector<64x128xbf16>
    %cst_54 = arith.constant dense<0.000000e+00> : vector<16x128xf32>
    %155 = tpu.matmul %152, %154, %cst_54 {dimension_numbers = #tpu.dot_dimension_numbers<[1], [0], [0], [1], [0, 0, 1, 1], [], []>} : vector<16x64xbf16>, vector<64x128xbf16>, vector<16x128xf32> -> vector<16x128xf32>
    %c0_55 = arith.constant 0 : index
    %c0_56 = arith.constant 0 : index
    %c0_57 = arith.constant 0 : index
    %156 = vector.load %arg16[%c0_55, %c0_56, %c0_57] : memref<1x1x128xf32, #tpu.memory_space<vmem>>, vector<1x1x128xf32>
    %157 = vector.shape_cast %156 : vector<1x1x128xf32> to vector<1x128xf32>
    %158 = vector.broadcast %157 : vector<1x128xf32> to vector<16x128xf32>
    %159 = arith.addf %155, %158 : vector<16x128xf32>
    %cst_58 = arith.constant 0.000000e+00 : f32
    %160 = vector.broadcast %cst_58 : f32 to vector<16x128xf32>
    %161 = arith.maximumf %159, %160 : vector<16x128xf32>
    %162 = arith.truncf %161 : vector<16x128xf32> to vector<16x128xbf16>
    %c0_59 = arith.constant 0 : index
    %c0_60 = arith.constant 0 : index
    %c0_61 = arith.constant 0 : index
    %163 = vector.load %arg17[%c0_59, %c0_60, %c0_61] : memref<1x128x64xbf16, #tpu.memory_space<vmem>>, vector<1x128x64xbf16>
    %164 = vector.shape_cast %163 : vector<1x128x64xbf16> to vector<128x64xbf16>
    %cst_62 = arith.constant dense<0.000000e+00> : vector<16x64xf32>
    %165 = tpu.matmul %162, %164, %cst_62 {dimension_numbers = #tpu.dot_dimension_numbers<[1], [0], [0], [1], [0, 0, 1, 1], [], []>} : vector<16x128xbf16>, vector<128x64xbf16>, vector<16x64xf32> -> vector<16x64xf32>
    %c0_63 = arith.constant 0 : index
    %c0_64 = arith.constant 0 : index
    %c0_65 = arith.constant 0 : index
    %166 = vector.load %arg18[%c0_63, %c0_64, %c0_65] : memref<1x1x64xf32, #tpu.memory_space<vmem>>, vector<1x1x64xf32>
    %167 = vector.shape_cast %166 : vector<1x1x64xf32> to vector<1x64xf32>
    %168 = vector.broadcast %167 : vector<1x64xf32> to vector<16x64xf32>
    %169 = arith.addf %165, %168 : vector<16x64xf32>
    %170 = arith.addf %151, %169 : vector<16x64xf32>
    %c0_66 = arith.constant 0 : index
    %c0_67 = arith.constant 0 : index
    %c0_68 = arith.constant 0 : index
    %171 = vector.load %arg19[%c0_66, %c0_67, %c0_68] : memref<1x1x64xf32, #tpu.memory_space<vmem>>, vector<1x1x64xf32>
    %172 = vector.shape_cast %171 : vector<1x1x64xf32> to vector<1x64xf32>
    %c0_69 = arith.constant 0 : index
    %c0_70 = arith.constant 0 : index
    %c0_71 = arith.constant 0 : index
    %173 = vector.load %arg20[%c0_69, %c0_70, %c0_71] : memref<1x1x64xf32, #tpu.memory_space<vmem>>, vector<1x1x64xf32>
    %174 = vector.shape_cast %173 : vector<1x1x64xf32> to vector<1x64xf32>
    %cst_72 = arith.constant dense<0.000000e+00> : vector<16xf32>
    %175 = vector.multi_reduction <add>, %170, %cst_72 [1] : vector<16x64xf32> to vector<16xf32>
    %176 = vector.shape_cast %175 : vector<16xf32> to vector<16x1xf32>
    %cst_73 = arith.constant 6.400000e+01 : f32
    %177 = vector.broadcast %cst_73 : f32 to vector<16x1xf32>
    %178 = arith.divf %176, %177 : vector<16x1xf32>
    %179 = vector.broadcast %178 : vector<16x1xf32> to vector<16x64xf32>
    %180 = arith.subf %170, %179 : vector<16x64xf32>
    %181 = arith.mulf %180, %180 : vector<16x64xf32>
    %cst_74 = arith.constant dense<0.000000e+00> : vector<16xf32>
    %182 = vector.multi_reduction <add>, %181, %cst_74 [1] : vector<16x64xf32> to vector<16xf32>
    %183 = vector.shape_cast %182 : vector<16xf32> to vector<16x1xf32>
    %cst_75 = arith.constant 6.400000e+01 : f32
    %184 = vector.broadcast %cst_75 : f32 to vector<16x1xf32>
    %185 = arith.divf %183, %184 : vector<16x1xf32>
    %186 = vector.broadcast %178 : vector<16x1xf32> to vector<16x64xf32>
    %187 = arith.subf %170, %186 : vector<16x64xf32>
    %cst_76 = arith.constant 9.99999974E-6 : f32
    %188 = vector.broadcast %cst_76 : f32 to vector<16x1xf32>
    %189 = arith.addf %185, %188 : vector<16x1xf32>
    %190 = math.rsqrt %189 : vector<16x1xf32>
    %191 = vector.broadcast %190 : vector<16x1xf32> to vector<16x64xf32>
    %192 = arith.mulf %187, %191 : vector<16x64xf32>
    %193 = vector.broadcast %172 : vector<1x64xf32> to vector<16x64xf32>
    %194 = arith.mulf %192, %193 : vector<16x64xf32>
    %195 = vector.broadcast %174 : vector<1x64xf32> to vector<16x64xf32>
    %196 = arith.addf %194, %195 : vector<16x64xf32>
    %c0_77 = arith.constant 0 : index
    %c0_78 = arith.constant 0 : index
    %197 = vector.load %arg22[%c0_77, %c0_78] : memref<16x64xf32, #tpu.memory_space<vmem>>, vector<16x64xf32>
    tpu.vector_store %arg22[%c0_77, %c0_78], %196 {strides = array<i32>} : memref<16x64xf32, #tpu.memory_space<vmem>>, vector<16x64xf32>,
    %c1_i32 = arith.constant 1 : i32
    %198 = arith.cmpi eq, %arg1, %c1_i32 : i32
    %199 = arith.extui %198 : i1 to i32
    %c0_i32_79 = arith.constant 0 : i32
    %200 = arith.cmpi ne, %199, %c0_i32_79 : i32
    scf.if %200 {
      %201 = vector.shape_cast %196 : vector<16x64xf32> to vector<2x8x64xf32>
      %c0_80 = arith.constant 0 : index
      %c0_81 = arith.constant 0 : index
      %c0_82 = arith.constant 0 : index
      %202 = vector.load %arg21[%c0_80, %c0_81, %c0_82] : memref<2x8x64xf32, #tpu.memory_space<vmem>>, vector<2x8x64xf32>
      tpu.vector_store %arg21[%c0_80, %c0_81, %c0_82], %201 {strides = array<i32>} : memref<2x8x64xf32, #tpu.memory_space<vmem>>, vector<2x8x64xf32>,
    } else {
    }
    return
  }
  func.func @transform_0(%arg0: i32, %arg1: i32) -> (i32, i32, i32) {
    %c0_i32 = arith.constant 0 : i32
    %c0_i32_0 = arith.constant 0 : i32
    %c0_i32_1 = arith.constant 0 : i32
    return %arg0, %c0_i32, %c0_i32_0 : i32, i32, i32
  }
  func.func @transform_1(%arg0: i32, %arg1: i32) -> (i32, i32) {
    %c0_i32 = arith.constant 0 : i32
    %c0_i32_0 = arith.constant 0 : i32
    %c0_i32_1 = arith.constant 0 : i32
    return %c0_i32, %c0_i32_0 : i32, i32
  }
  func.func @transform_2(%arg0: i32, %arg1: i32) -> (i32, i32, i32) {
    %c0_i32 = arith.constant 0 : i32
    %c0_i32_0 = arith.constant 0 : i32
    %c0_i32_1 = arith.constant 0 : i32
    return %arg0, %c0_i32, %c0_i32_0 : i32, i32, i32
  }
  func.func @transform_3(%arg0: i32, %arg1: i32) -> (i32, i32) {
    %c0_i32 = arith.constant 0 : i32
    %c0_i32_0 = arith.constant 0 : i32
    %c0_i32_1 = arith.constant 0 : i32
    return %c0_i32, %c0_i32_0 : i32, i32
  }
  func.func @transform_4(%arg0: i32, %arg1: i32) -> (i32, i32) {
    %c0_i32 = arith.constant 0 : i32
    %c0_i32_0 = arith.constant 0 : i32
    %c0_i32_1 = arith.constant 0 : i32
    return %c0_i32, %c0_i32_0 : i32, i32
  }
  func.func @transform_5(%arg0: i32, %arg1: i32) -> (i32, i32) {
    %c0_i32 = arith.constant 0 : i32
    %c0_i32_0 = arith.constant 0 : i32
    %c0_i32_1 = arith.constant 0 : i32
    return %c0_i32, %c0_i32_0 : i32, i32
  }
  func.func @transform_6(%arg0: i32, %arg1: i32) -> (i32, i32) {
    %c0_i32 = arith.constant 0 : i32
    %c0_i32_0 = arith.constant 0 : i32
    %c0_i32_1 = arith.constant 0 : i32
    return %c0_i32, %c0_i32_0 : i32, i32
  }
  func.func @transform_7(%arg0: i32, %arg1: i32) -> (i32, i32, i32) {
    %c0_i32 = arith.constant 0 : i32
    %c0_i32_0 = arith.constant 0 : i32
    %c0_i32_1 = arith.constant 0 : i32
    return %arg1, %c0_i32, %c0_i32_0 : i32, i32, i32
  }
  func.func @transform_8(%arg0: i32, %arg1: i32) -> (i32, i32, i32) {
    %c0_i32 = arith.constant 0 : i32
    %c0_i32_0 = arith.constant 0 : i32
    %c0_i32_1 = arith.constant 0 : i32
    return %arg1, %c0_i32, %c0_i32_0 : i32, i32, i32
  }
  func.func @transform_9(%arg0: i32, %arg1: i32) -> (i32, i32, i32) {
    %c0_i32 = arith.constant 0 : i32
    %c0_i32_0 = arith.constant 0 : i32
    %c0_i32_1 = arith.constant 0 : i32
    return %arg1, %c0_i32, %c0_i32_0 : i32, i32, i32
  }
  func.func @transform_10(%arg0: i32, %arg1: i32) -> (i32, i32, i32) {
    %c0_i32 = arith.constant 0 : i32
    %c0_i32_0 = arith.constant 0 : i32
    %c0_i32_1 = arith.constant 0 : i32
    return %arg1, %c0_i32, %c0_i32_0 : i32, i32, i32
  }
  func.func @transform_11(%arg0: i32, %arg1: i32) -> (i32, i32, i32) {
    %c0_i32 = arith.constant 0 : i32
    %c0_i32_0 = arith.constant 0 : i32
    %c0_i32_1 = arith.constant 0 : i32
    return %arg1, %c0_i32, %c0_i32_0 : i32, i32, i32
  }
  func.func @transform_12(%arg0: i32, %arg1: i32) -> (i32, i32, i32) {
    %c0_i32 = arith.constant 0 : i32
    %c0_i32_0 = arith.constant 0 : i32
    %c0_i32_1 = arith.constant 0 : i32
    return %arg1, %c0_i32, %c0_i32_0 : i32, i32, i32
  }
  func.func @transform_13(%arg0: i32, %arg1: i32) -> (i32, i32, i32) {
    %c0_i32 = arith.constant 0 : i32
    %c0_i32_0 = arith.constant 0 : i32
    %c0_i32_1 = arith.constant 0 : i32
    return %arg1, %c0_i32, %c0_i32_0 : i32, i32, i32
  }
  func.func @transform_14(%arg0: i32, %arg1: i32) -> (i32, i32, i32) {
    %c0_i32 = arith.constant 0 : i32
    %c0_i32_0 = arith.constant 0 : i32
    %c0_i32_1 = arith.constant 0 : i32
    return %arg1, %c0_i32, %c0_i32_0 : i32, i32, i32
  }
  func.func @transform_15(%arg0: i32, %arg1: i32) -> (i32, i32, i32) {
    %c0_i32 = arith.constant 0 : i32
    %c0_i32_0 = arith.constant 0 : i32
    %c0_i32_1 = arith.constant 0 : i32
    return %arg1, %c0_i32, %c0_i32_0 : i32, i32, i32
  }
  func.func @transform_16(%arg0: i32, %arg1: i32) -> (i32, i32, i32) {
    %c0_i32 = arith.constant 0 : i32
    %c0_i32_0 = arith.constant 0 : i32
    %c0_i32_1 = arith.constant 0 : i32
    return %arg1, %c0_i32, %c0_i32_0 : i32, i32, i32
  }
  func.func @transform_17(%arg0: i32, %arg1: i32) -> (i32, i32, i32) {
    %c0_i32 = arith.constant 0 : i32
    %c0_i32_0 = arith.constant 0 : i32
    %c0_i32_1 = arith.constant 0 : i32
    return %arg1, %c0_i32, %c0_i32_0 : i32, i32, i32
  }
  func.func @transform_18(%arg0: i32, %arg1: i32) -> (i32, i32, i32) {
    %c0_i32 = arith.constant 0 : i32
    %c0_i32_0 = arith.constant 0 : i32
    %c0_i32_1 = arith.constant 0 : i32
    return %arg1, %c0_i32, %c0_i32_0 : i32, i32, i32
  }
  func.func @transform_19(%arg0: i32, %arg1: i32) -> (i32, i32, i32) {
    %c0_i32 = arith.constant 0 : i32
    %c0_i32_0 = arith.constant 0 : i32
    %c0_i32_1 = arith.constant 0 : i32
    return %arg0, %c0_i32, %c0_i32_0 : i32, i32, i32
  }
}

</mosaic_0001>

<llo_original>
// kernel: encoder_forward.1
$region0: #{encoder_forward.1}
  #allocation0 [shape = 'u32[]', space=smem, size = 0x4, offset = 0x4, fixed_abs, tag = 'smem constant byte address 0x4 - core index']
  #allocation1 [shape = 'u32[144,128]{1,0:T(1,128)}', space=vmem, size = 0x12000, scoped, tag = 'internal scratch']
  #allocation2 [shape = 'f32[16,64]{1,0:T(8,128)}', space=vmem, size = 0x2000, scoped, tag = 'scratch operand']
  %s0 = inlined_call_operand.vmem [shape: f32[2,8,32], index: 0, kind: input, shape index: {}]
  %s1 = inlined_call_operand.vmem [shape: f32[8,64], index: 1, kind: input, shape index: {}]
  %s2 = inlined_call_operand.vmem [shape: f32[2,1,8], index: 2, kind: input, shape index: {}]
  %s3 = inlined_call_operand.vmem [shape: bf16[32,64], index: 3, kind: input, shape index: {}]
  %s4 = inlined_call_operand.vmem [shape: f32[1,64], index: 4, kind: input, shape index: {}]
  %s5 = inlined_call_operand.vmem [shape: f32[1,64], index: 5, kind: input, shape index: {}]
  %s6 = inlined_call_operand.vmem [shape: f32[1,64], index: 6, kind: input, shape index: {}]
  %s7 = inlined_call_operand.vmem [shape: bf16[2,64,192], index: 7, kind: input, shape index: {}]
  %s8 = inlined_call_operand.vmem [shape: f32[2,1,192], index: 8, kind: input, shape index: {}]
  %s9 = inlined_call_operand.vmem [shape: bf16[2,64,64], index: 9, kind: input, shape index: {}]
  %s10 = inlined_call_operand.vmem [shape: f32[2,1,64], index: 10, kind: input, shape index: {}]
  %s11 = inlined_call_operand.vmem [shape: f32[2,1,64], index: 11, kind: input, shape index: {}]
  %s12 = inlined_call_operand.vmem [shape: f32[2,1,64], index: 12, kind: input, shape index: {}]
  %s13 = inlined_call_operand.vmem [shape: bf16[2,64,128], index: 13, kind: input, shape index: {}]
  %s14 = inlined_call_operand.vmem [shape: f32[2,1,128], index: 14, kind: input, shape index: {}]
  %s15 = inlined_call_operand.vmem [shape: bf16[2,128,64], index: 15, kind: input, shape index: {}]
  %s16 = inlined_call_operand.vmem [shape: f32[2,1,64], index: 16, kind: input, shape index: {}]
  %s17 = inlined_call_operand.vmem [shape: f32[2,1,64], index: 17, kind: input, shape index: {}]
  %s18 = inlined_call_operand.vmem [shape: f32[2,1,64], index: 18, kind: input, shape index: {}]
  %s19 = inlined_call_operand.hbm [shape: f32[2,8,64], index: 19, kind: output, shape index: {}]
  %s20 = sld [smem:[#allocation0]]
  $region117: #{encoder_forward.1} parent=0
    _
  %s22 = ssub.s32 1, %s20
  %s23 = scalar_select 0, %s22, %s20
  $region1: #{encoder_forward.1} parent=0
    #allocation3 [shape = 'u8[8192]{0}', space=vmem, size = 0x2000, scoped, tag = 'output window, operand 0, single buffered']
    #allocation4 [shape = 's32[2]{0}', space=sflag, size = 0x8, scoped, tag = 'scoped memory for encoder_forward.1']
    %24 = vsyncpa [#allocation4], 0
    loop: start=0, step=1, limit=4
    $region2: #{encoder_forward.1} parent=1 // loop_pre_header
      _
    $region3: #{encoder_forward.1} parent=1 // loop_header
      %s26 = sphi 0, %s30
      %p27 = scmp.ge.s32.totalorder %s26, 4
      %s33 = sphi 0, %s45
      %s34 = sphi 0, %s41
      %s35 = sphi 0, %s33
      %s36 = sphi 0, %s34
      %s37 = sphi 0, %s35
      %s38 = sphi 0, %s36
      %s48 = sphi 0, %s50
      %s51 = sphi 0, %s48
      %s52 = sphi 0, %s51
      %s68 = sphi 0, %s52
      %s72 = sphi 0, %s72
      %s74 = sphi 0, %s72
      %s75 = sphi 0, %s74
      %s89 = sphi 0, %s75
      %s95 = sphi 0, %s97
      %s98 = sphi 0, %s95
      %s99 = sphi 0, %s98
      %s115 = sphi 0, %s99
      %s119 = sphi 0, %s119
      %s121 = sphi 0, %s119
      %s122 = sphi 0, %s121
      %s136 = sphi 0, %s122
      %s140 = sphi 0, %s140
      %s142 = sphi 0, %s140
      %s143 = sphi 0, %s142
      %s157 = sphi 0, %s143
      %s161 = sphi 0, %s161
      %s163 = sphi 0, %s161
      %s164 = sphi 0, %s163
      %s178 = sphi 0, %s164
      %s182 = sphi 0, %s182
      %s184 = sphi 0, %s182
      %s185 = sphi 0, %s184
      %s199 = sphi 0, %s185
      %s205 = sphi 0, %s207
      %s208 = sphi 0, %s205
      %s209 = sphi 0, %s208
      %s225 = sphi 0, %s209
      %s231 = sphi 0, %s233
      %s234 = sphi 0, %s231
      %s235 = sphi 0, %s234
      %s251 = sphi 0, %s235
      %s257 = sphi 0, %s259
      %s260 = sphi 0, %s257
      %s261 = sphi 0, %s260
      %s277 = sphi 0, %s261
      %s283 = sphi 0, %s285
      %s286 = sphi 0, %s283
      %s287 = sphi 0, %s286
      %s303 = sphi 0, %s287
      %s309 = sphi 0, %s311
      %s312 = sphi 0, %s309
      %s313 = sphi 0, %s312
      %s329 = sphi 0, %s313
      %s335 = sphi 0, %s337
      %s338 = sphi 0, %s335
      %s339 = sphi 0, %s338
      %s355 = sphi 0, %s339
      %s361 = sphi 0, %s363
      %s364 = sphi 0, %s361
      %s365 = sphi 0, %s364
      %s381 = sphi 0, %s365
      %s387 = sphi 0, %s389
      %s390 = sphi 0, %s387
      %s391 = sphi 0, %s390
      %s407 = sphi 0, %s391
      %s413 = sphi 0, %s415
      %s416 = sphi 0, %s413
      %s417 = sphi 0, %s416
      %s433 = sphi 0, %s417
      %s439 = sphi 0, %s441
      %s442 = sphi 0, %s439
      %s443 = sphi 0, %s442
      %s459 = sphi 0, %s443
      %s465 = sphi 0, %s467
      %s468 = sphi 0, %s465
      %s469 = sphi 0, %s468
      %s485 = sphi 0, %s469
      %s491 = sphi 0, %s493
      %s494 = sphi 0, %s491
      %s495 = sphi 0, %s494
      %s511 = sphi 0, %s495
      %s517 = sphi 0, %s519
      %s520 = sphi 0, %s517
      %s521 = sphi 0, %s520
      %s537 = sphi 0, %s521
    $region4: #{encoder_forward.1} parent=1 // loop_header_branch
      %29 = sbr.rel (%p27) target = $region8
    $region5: #{encoder_forward.1} parent=1 // loop_body
      %s31 = ssub.s32 %s26, 1
      %s32 = ssub.s32 %s26, 2
      %s39 = sadd.s32 1, %s34
      %p40 = scmp.ge.s32.totalorder %s39, 2
      %s41 = scalar_select %p40, 0, %s39
      %s42 = sadd.s32 1, %s33
      %s43 = scalar_select %p40, %s42, %s33
      %p44 = scmp.ge.s32.totalorder %s43, 1
      %s45 = scalar_select %p44, 0, %s43
      %s46 = ssub.s32 %s33, %s45
      %p47 = scmp.eq.s32.totalorder %s46, 0
      %s49 = sadd.s32 %s48, 1
      %s50 = scalar_select %p47, %s48, %s49
      %p53 = pneg %p47
      %p54 = scmp.eq.s32.totalorder %s26, 1
      %p55 = por %p53, %p54
      %p56 = scmp.ne.s32.totalorder %s48, %s51
      %p57 = scmp.eq.s32.totalorder %s26, 0
      %p58 = por %p56, %p57
      %p59 = scmp.ne.s32.totalorder %s48, %s51
      %p60 = scmp.eq.s32.totalorder %s31, 1
      %p61 = por %p59, %p60
      %p62 = scmp.ne.s32.totalorder %s51, %s52
      %p63 = scmp.eq.s32.totalorder %s31, 0
      %p64 = por %p62, %p63
      %p65 = scmp.ne.s32.totalorder %s51, %s52
      %p66 = scmp.eq.s32.totalorder %s32, 1
      %p67 = por %p65, %p66
      %p69 = scmp.ne.s32.totalorder %s52, %s68
      %p70 = scmp.eq.s32.totalorder %s32, 0
      %p71 = por %p69, %p70
      %s73 = sadd.s32 %s72, 1
      %p76 = scmp.eq.s32.totalorder %s26, 1
      %p77 = scmp.ne.s32.totalorder %s72, %s74
      %p78 = scmp.eq.s32.totalorder %s26, 0
      %p79 = por %p77, %p78
      %p80 = scmp.ne.s32.totalorder %s72, %s74
      %p81 = scmp.eq.s32.totalorder %s31, 1
      %p82 = por %p80, %p81
      %p83 = scmp.ne.s32.totalorder %s74, %s75
      %p84 = scmp.eq.s32.totalorder %s31, 0
      %p85 = por %p83, %p84
      %p86 = scmp.ne.s32.totalorder %s74, %s75
      %p87 = scmp.eq.s32.totalorder %s32, 1
      %p88 = por %p86, %p87
      %p90 = scmp.ne.s32.totalorder %s75, %s89
      %p91 = scmp.eq.s32.totalorder %s32, 0
      %p92 = por %p90, %p91
      %s93 = ssub.s32 %s33, %s45
      %p94 = scmp.eq.s32.totalorder %s93, 0
      %s96 = sadd.s32 %s95, 1
      %s97 = scalar_select %p94, %s95, %s96
      %p100 = pneg %p94
      %p101 = scmp.eq.s32.totalorder %s26, 1
      %p102 = por %p100, %p101
      %p103 = scmp.ne.s32.totalorder %s95, %s98
      %p104 = scmp.eq.s32.totalorder %s26, 0
      %p105 = por %p103, %p104
      %p106 = scmp.ne.s32.totalorder %s95, %s98
      %p107 = scmp.eq.s32.totalorder %s31, 1
      %p108 = por %p106, %p107
      %p109 = scmp.ne.s32.totalorder %s98, %s99
      %p110 = scmp.eq.s32.totalorder %s31, 0
      %p111 = por %p109, %p110
      %p112 = scmp.ne.s32.totalorder %s98, %s99
      %p113 = scmp.eq.s32.totalorder %s32, 1
      %p114 = por %p112, %p113
      %p116 = scmp.ne.s32.totalorder %s99, %s115
      %p117 = scmp.eq.s32.totalorder %s32, 0
      %p118 = por %p116, %p117
      %s120 = sadd.s32 %s119, 1
      %p123 = scmp.eq.s32.totalorder %s26, 1
      %p124 = scmp.ne.s32.totalorder %s119, %s121
      %p125 = scmp.eq.s32.totalorder %s26, 0
      %p126 = por %p124, %p125
      %p127 = scmp.ne.s32.totalorder %s119, %s121
      %p128 = scmp.eq.s32.totalorder %s31, 1
      %p129 = por %p127, %p128
      %p130 = scmp.ne.s32.totalorder %s121, %s122
      %p131 = scmp.eq.s32.totalorder %s31, 0
      %p132 = por %p130, %p131
      %p133 = scmp.ne.s32.totalorder %s121, %s122
      %p134 = scmp.eq.s32.totalorder %s32, 1
      %p135 = por %p133, %p134
      %p137 = scmp.ne.s32.totalorder %s122, %s136
      %p138 = scmp.eq.s32.totalorder %s32, 0
      %p139 = por %p137, %p138
      %s141 = sadd.s32 %s140, 1
      %p144 = scmp.eq.s32.totalorder %s26, 1
      %p145 = scmp.ne.s32.totalorder %s140, %s142
      %p146 = scmp.eq.s32.totalorder %s26, 0
      %p147 = por %p145, %p146
      %p148 = scmp.ne.s32.totalorder %s140, %s142
      %p149 = scmp.eq.s32.totalorder %s31, 1
      %p150 = por %p148, %p149
      %p151 = scmp.ne.s32.totalorder %s142, %s143
      %p152 = scmp.eq.s32.totalorder %s31, 0
      %p153 = por %p151, %p152
      %p154 = scmp.ne.s32.totalorder %s142, %s143
      %p155 = scmp.eq.s32.totalorder %s32, 1
      %p156 = por %p154, %p155
      %p158 = scmp.ne.s32.totalorder %s143, %s157
      %p159 = scmp.eq.s32.totalorder %s32, 0
      %p160 = por %p158, %p159
      %s162 = sadd.s32 %s161, 1
      %p165 = scmp.eq.s32.totalorder %s26, 1
      %p166 = scmp.ne.s32.totalorder %s161, %s163
      %p167 = scmp.eq.s32.totalorder %s26, 0
      %p168 = por %p166, %p167
      %p169 = scmp.ne.s32.totalorder %s161, %s163
      %p170 = scmp.eq.s32.totalorder %s31, 1
      %p171 = por %p169, %p170
      %p172 = scmp.ne.s32.totalorder %s163, %s164
      %p173 = scmp.eq.s32.totalorder %s31, 0
      %p174 = por %p172, %p173
      %p175 = scmp.ne.s32.totalorder %s163, %s164
      %p176 = scmp.eq.s32.totalorder %s32, 1
      %p177 = por %p175, %p176
      %p179 = scmp.ne.s32.totalorder %s164, %s178
      %p180 = scmp.eq.s32.totalorder %s32, 0
      %p181 = por %p179, %p180
      %s183 = sadd.s32 %s182, 1
      %p186 = scmp.eq.s32.totalorder %s26, 1
      %p187 = scmp.ne.s32.totalorder %s182, %s184
      %p188 = scmp.eq.s32.totalorder %s26, 0
      %p189 = por %p187, %p188
      %p190 = scmp.ne.s32.totalorder %s182, %s184
      %p191 = scmp.eq.s32.totalorder %s31, 1
      %p192 = por %p190, %p191
      %p193 = scmp.ne.s32.totalorder %s184, %s185
      %p194 = scmp.eq.s32.totalorder %s31, 0
      %p195 = por %p193, %p194
      %p196 = scmp.ne.s32.totalorder %s184, %s185
      %p197 = scmp.eq.s32.totalorder %s32, 1
      %p198 = por %p196, %p197
      %p200 = scmp.ne.s32.totalorder %s185, %s199
      %p201 = scmp.eq.s32.totalorder %s32, 0
      %p202 = por %p200, %p201
      %s203 = ssub.s32 %s34, %s41
      %p204 = scmp.eq.s32.totalorder %s203, 0
      %s206 = sadd.s32 %s205, 1
      %s207 = scalar_select %p204, %s205, %s206
      %p210 = pneg %p204
      %p211 = scmp.eq.s32.totalorder %s26, 1
      %p212 = por %p210, %p211
      %p213 = scmp.ne.s32.totalorder %s205, %s208
      %p214 = scmp.eq.s32.totalorder %s26, 0
      %p215 = por %p213, %p214
      %p216 = scmp.ne.s32.totalorder %s205, %s208
      %p217 = scmp.eq.s32.totalorder %s31, 1
      %p218 = por %p216, %p217
      %p219 = scmp.ne.s32.totalorder %s208, %s209
      %p220 = scmp.eq.s32.totalorder %s31, 0
      %p221 = por %p219, %p220
      %p222 = scmp.ne.s32.totalorder %s208, %s209
      %p223 = scmp.eq.s32.totalorder %s32, 1
      %p224 = por %p222, %p223
      %p226 = scmp.ne.s32.totalorder %s209, %s225
      %p227 = scmp.eq.s32.totalorder %s32, 0
      %p228 = por %p226, %p227
      %s229 = ssub.s32 %s34, %s41
      %p230 = scmp.eq.s32.totalorder %s229, 0
      %s232 = sadd.s32 %s231, 1
      %s233 = scalar_select %p230, %s231, %s232
      %p236 = pneg %p230
      %p237 = scmp.eq.s32.totalorder %s26, 1
      %p238 = por %p236, %p237
      %p239 = scmp.ne.s32.totalorder %s231, %s234
      %p240 = scmp.eq.s32.totalorder %s26, 0
      %p241 = por %p239, %p240
      %p242 = scmp.ne.s32.totalorder %s231, %s234
      %p243 = scmp.eq.s32.totalorder %s31, 1
      %p244 = por %p242, %p243
      %p245 = scmp.ne.s32.totalorder %s234, %s235
      %p246 = scmp.eq.s32.totalorder %s31, 0
      %p247 = por %p245, %p246
      %p248 = scmp.ne.s32.totalorder %s234, %s235
      %p249 = scmp.eq.s32.totalorder %s32, 1
      %p250 = por %p248, %p249
      %p252 = scmp.ne.s32.totalorder %s235, %s251
      %p253 = scmp.eq.s32.totalorder %s32, 0
      %p254 = por %p252, %p253
      %s255 = ssub.s32 %s34, %s41
      %p256 = scmp.eq.s32.totalorder %s255, 0
      %s258 = sadd.s32 %s257, 1
      %s259 = scalar_select %p256, %s257, %s258
      %p262 = pneg %p256
      %p263 = scmp.eq.s32.totalorder %s26, 1
      %p264 = por %p262, %p263
      %p265 = scmp.ne.s32.totalorder %s257, %s260
      %p266 = scmp.eq.s32.totalorder %s26, 0
      %p267 = por %p265, %p266
      %p268 = scmp.ne.s32.totalorder %s257, %s260
      %p269 = scmp.eq.s32.totalorder %s31, 1
      %p270 = por %p268, %p269
      %p271 = scmp.ne.s32.totalorder %s260, %s261
      %p272 = scmp.eq.s32.totalorder %s31, 0
      %p273 = por %p271, %p272
      %p274 = scmp.ne.s32.totalorder %s260, %s261
      %p275 = scmp.eq.s32.totalorder %s32, 1
      %p276 = por %p274, %p275
      %p278 = scmp.ne.s32.totalorder %s261, %s277
      %p279 = scmp.eq.s32.totalorder %s32, 0
      %p280 = por %p278, %p279
      %s281 = ssub.s32 %s34, %s41
      %p282 = scmp.eq.s32.totalorder %s281, 0
      %s284 = sadd.s32 %s283, 1
      %s285 = scalar_select %p282, %s283, %s284
      %p288 = pneg %p282
      %p289 = scmp.eq.s32.totalorder %s26, 1
      %p290 = por %p288, %p289
      %p291 = scmp.ne.s32.totalorder %s283, %s286
      %p292 = scmp.eq.s32.totalorder %s26, 0
      %p293 = por %p291, %p292
      %p294 = scmp.ne.s32.totalorder %s283, %s286
      %p295 = scmp.eq.s32.totalorder %s31, 1
      %p296 = por %p294, %p295
      %p297 = scmp.ne.s32.totalorder %s286, %s287
      %p298 = scmp.eq.s32.totalorder %s31, 0
      %p299 = por %p297, %p298
      %p300 = scmp.ne.s32.totalorder %s286, %s287
      %p301 = scmp.eq.s32.totalorder %s32, 1
      %p302 = por %p300, %p301
      %p304 = scmp.ne.s32.totalorder %s287, %s303
      %p305 = scmp.eq.s32.totalorder %s32, 0
      %p306 = por %p304, %p305
      %s307 = ssub.s32 %s34, %s41
      %p308 = scmp.eq.s32.totalorder %s307, 0
      %s310 = sadd.s32 %s309, 1
      %s311 = scalar_select %p308, %s309, %s310
      %p314 = pneg %p308
      %p315 = scmp.eq.s32.totalorder %s26, 1
      %p316 = por %p314, %p315
      %p317 = scmp.ne.s32.totalorder %s309, %s312
      %p318 = scmp.eq.s32.totalorder %s26, 0
      %p319 = por %p317, %p318
      %p320 = scmp.ne.s32.totalorder %s309, %s312
      %p321 = scmp.eq.s32.totalorder %s31, 1
      %p322 = por %p320, %p321
      %p323 = scmp.ne.s32.totalorder %s312, %s313
      %p324 = scmp.eq.s32.totalorder %s31, 0
      %p325 = por %p323, %p324
      %p326 = scmp.ne.s32.totalorder %s312, %s313
      %p327 = scmp.eq.s32.totalorder %s32, 1
      %p328 = por %p326, %p327
      %p330 = scmp.ne.s32.totalorder %s313, %s329
      %p331 = scmp.eq.s32.totalorder %s32, 0
      %p332 = por %p330, %p331
      %s333 = ssub.s32 %s34, %s41
      %p334 = scmp.eq.s32.totalorder %s333, 0
      %s336 = sadd.s32 %s335, 1
      %s337 = scalar_select %p334, %s335, %s336
      %p340 = pneg %p334
      %p341 = scmp.eq.s32.totalorder %s26, 1
      %p342 = por %p340, %p341
      %p343 = scmp.ne.s32.totalorder %s335, %s338
      %p344 = scmp.eq.s32.totalorder %s26, 0
      %p345 = por %p343, %p344
      %p346 = scmp.ne.s32.totalorder %s335, %s338
      %p347 = scmp.eq.s32.totalorder %s31, 1
      %p348 = por %p346, %p347
      %p349 = scmp.ne.s32.totalorder %s338, %s339
      %p350 = scmp.eq.s32.totalorder %s31, 0
      %p351 = por %p349, %p350
      %p352 = scmp.ne.s32.totalorder %s338, %s339
      %p353 = scmp.eq.s32.totalorder %s32, 1
      %p354 = por %p352, %p353
      %p356 = scmp.ne.s32.totalorder %s339, %s355
      %p357 = scmp.eq.s32.totalorder %s32, 0
      %p358 = por %p356, %p357
      %s359 = ssub.s32 %s34, %s41
      %p360 = scmp.eq.s32.totalorder %s359, 0
      %s362 = sadd.s32 %s361, 1
      %s363 = scalar_select %p360, %s361, %s362
      %p366 = pneg %p360
      %p367 = scmp.eq.s32.totalorder %s26, 1
      %p368 = por %p366, %p367
      %p369 = scmp.ne.s32.totalorder %s361, %s364
      %p370 = scmp.eq.s32.totalorder %s26, 0
      %p371 = por %p369, %p370
      %p372 = scmp.ne.s32.totalorder %s361, %s364
      %p373 = scmp.eq.s32.totalorder %s31, 1
      %p374 = por %p372, %p373
      %p375 = scmp.ne.s32.totalorder %s364, %s365
      %p376 = scmp.eq.s32.totalorder %s31, 0
      %p377 = por %p375, %p376
      %p378 = scmp.ne.s32.totalorder %s364, %s365
      %p379 = scmp.eq.s32.totalorder %s32, 1
      %p380 = por %p378, %p379
      %p382 = scmp.ne.s32.totalorder %s365, %s381
      %p383 = scmp.eq.s32.totalorder %s32, 0
      %p384 = por %p382, %p383
      %s385 = ssub.s32 %s34, %s41
      %p386 = scmp.eq.s32.totalorder %s385, 0
      %s388 = sadd.s32 %s387, 1
      %s389 = scalar_select %p386, %s387, %s388
      %p392 = pneg %p386
      %p393 = scmp.eq.s32.totalorder %s26, 1
      %p394 = por %p392, %p393
      %p395 = scmp.ne.s32.totalorder %s387, %s390
      %p396 = scmp.eq.s32.totalorder %s26, 0
      %p397 = por %p395, %p396
      %p398 = scmp.ne.s32.totalorder %s387, %s390
      %p399 = scmp.eq.s32.totalorder %s31, 1
      %p400 = por %p398, %p399
      %p401 = scmp.ne.s32.totalorder %s390, %s391
      %p402 = scmp.eq.s32.totalorder %s31, 0
      %p403 = por %p401, %p402
      %p404 = scmp.ne.s32.totalorder %s390, %s391
      %p405 = scmp.eq.s32.totalorder %s32, 1
      %p406 = por %p404, %p405
      %p408 = scmp.ne.s32.totalorder %s391, %s407
      %p409 = scmp.eq.s32.totalorder %s32, 0
      %p410 = por %p408, %p409
      %s411 = ssub.s32 %s34, %s41
      %p412 = scmp.eq.s32.totalorder %s411, 0
      %s414 = sadd.s32 %s413, 1
      %s415 = scalar_select %p412, %s413, %s414
      %p418 = pneg %p412
      %p419 = scmp.eq.s32.totalorder %s26, 1
      %p420 = por %p418, %p419
      %p421 = scmp.ne.s32.totalorder %s413, %s416
      %p422 = scmp.eq.s32.totalorder %s26, 0
      %p423 = por %p421, %p422
      %p424 = scmp.ne.s32.totalorder %s413, %s416
      %p425 = scmp.eq.s32.totalorder %s31, 1
      %p426 = por %p424, %p425
      %p427 = scmp.ne.s32.totalorder %s416, %s417
      %p428 = scmp.eq.s32.totalorder %s31, 0
      %p429 = por %p427, %p428
      %p430 = scmp.ne.s32.totalorder %s416, %s417
      %p431 = scmp.eq.s32.totalorder %s32, 1
      %p432 = por %p430, %p431
      %p434 = scmp.ne.s32.totalorder %s417, %s433
      %p435 = scmp.eq.s32.totalorder %s32, 0
      %p436 = por %p434, %p435
      %s437 = ssub.s32 %s34, %s41
      %p438 = scmp.eq.s32.totalorder %s437, 0
      %s440 = sadd.s32 %s439, 1
      %s441 = scalar_select %p438, %s439, %s440
      %p444 = pneg %p438
      %p445 = scmp.eq.s32.totalorder %s26, 1
      %p446 = por %p444, %p445
      %p447 = scmp.ne.s32.totalorder %s439, %s442
      %p448 = scmp.eq.s32.totalorder %s26, 0
      %p449 = por %p447, %p448
      %p450 = scmp.ne.s32.totalorder %s439, %s442
      %p451 = scmp.eq.s32.totalorder %s31, 1
      %p452 = por %p450, %p451
      %p453 = scmp.ne.s32.totalorder %s442, %s443
      %p454 = scmp.eq.s32.totalorder %s31, 0
      %p455 = por %p453, %p454
      %p456 = scmp.ne.s32.totalorder %s442, %s443
      %p457 = scmp.eq.s32.totalorder %s32, 1
      %p458 = por %p456, %p457
      %p460 = scmp.ne.s32.totalorder %s443, %s459
      %p461 = scmp.eq.s32.totalorder %s32, 0
      %p462 = por %p460, %p461
      %s463 = ssub.s32 %s34, %s41
      %p464 = scmp.eq.s32.totalorder %s463, 0
      %s466 = sadd.s32 %s465, 1
      %s467 = scalar_select %p464, %s465, %s466
      %p470 = pneg %p464
      %p471 = scmp.eq.s32.totalorder %s26, 1
      %p472 = por %p470, %p471
      %p473 = scmp.ne.s32.totalorder %s465, %s468
      %p474 = scmp.eq.s32.totalorder %s26, 0
      %p475 = por %p473, %p474
      %p476 = scmp.ne.s32.totalorder %s465, %s468
      %p477 = scmp.eq.s32.totalorder %s31, 1
      %p478 = por %p476, %p477
      %p479 = scmp.ne.s32.totalorder %s468, %s469
      %p480 = scmp.eq.s32.totalorder %s31, 0
      %p481 = por %p479, %p480
      %p482 = scmp.ne.s32.totalorder %s468, %s469
      %p483 = scmp.eq.s32.totalorder %s32, 1
      %p484 = por %p482, %p483
      %p486 = scmp.ne.s32.totalorder %s469, %s485
      %p487 = scmp.eq.s32.totalorder %s32, 0
      %p488 = por %p486, %p487
      %s489 = ssub.s32 %s34, %s41
      %p490 = scmp.eq.s32.totalorder %s489, 0
      %s492 = sadd.s32 %s491, 1
      %s493 = scalar_select %p490, %s491, %s492
      %p496 = pneg %p490
      %p497 = scmp.eq.s32.totalorder %s26, 1
      %p498 = por %p496, %p497
      %p499 = scmp.ne.s32.totalorder %s491, %s494
      %p500 = scmp.eq.s32.totalorder %s26, 0
      %p501 = por %p499, %p500
      %p502 = scmp.ne.s32.totalorder %s491, %s494
      %p503 = scmp.eq.s32.totalorder %s31, 1
      %p504 = por %p502, %p503
      %p505 = scmp.ne.s32.totalorder %s494, %s495
      %p506 = scmp.eq.s32.totalorder %s31, 0
      %p507 = por %p505, %p506
      %p508 = scmp.ne.s32.totalorder %s494, %s495
      %p509 = scmp.eq.s32.totalorder %s32, 1
      %p510 = por %p508, %p509
      %p512 = scmp.ne.s32.totalorder %s495, %s511
      %p513 = scmp.eq.s32.totalorder %s32, 0
      %p514 = por %p512, %p513
      %s515 = ssub.s32 %s33, %s45
      %p516 = scmp.eq.s32.totalorder %s515, 0
      %s518 = sadd.s32 %s517, 1
      %s519 = scalar_select %p516, %s517, %s518
      %p522 = pneg %p516
      %p523 = scmp.eq.s32.totalorder %s26, 1
      %p524 = por %p522, %p523
      %p525 = scmp.ne.s32.totalorder %s517, %s520
      %p526 = scmp.eq.s32.totalorder %s26, 0
      %p527 = por %p525, %p526
      %p528 = scmp.ne.s32.totalorder %s517, %s520
      %p529 = scmp.eq.s32.totalorder %s31, 1
      %p530 = por %p528, %p529
      %p531 = scmp.ne.s32.totalorder %s520, %s521
      %p532 = scmp.eq.s32.totalorder %s31, 0
      %p533 = por %p531, %p532
      %p534 = scmp.ne.s32.totalorder %s520, %s521
      %p535 = scmp.eq.s32.totalorder %s32, 1
      %p536 = por %p534, %p535
      %p538 = scmp.ne.s32.totalorder %s521, %s537
      %p539 = scmp.eq.s32.totalorder %s32, 0
      %p540 = por %p538, %p539
      %p541 = scmp.le.s32.totalorder 1, %s26
      %p542 = scmp.lt.s32.totalorder %s26, 3
      %p543 = pnand %p541, %p542
      %p544 = pneg %p543
      // Predicated region
      $region9: #{encoder_forward.1} parent=5 // pred_check
        _
      $region10: #{encoder_forward.1} parent=5 // pred_check_branch
        %546 = sbr.rel (%p543) target = $region12
      $region11: #{encoder_forward.1} parent=5 // pred_region
        %s547 = ssub.s32 %s26, 1
        // Predicated region
        $region13: #{encoder_forward.1} parent=11 // pred_check
          %p548 = pneg %p64
        $region14: #{encoder_forward.1} parent=11 // pred_check_branch
          %550 = sbr.rel (%p548) target = $region16
        $region15: #{encoder_forward.1} parent=11 // pred_region
          %s551 = smul.u32 2, %s35
          %p552 = scmp.lt.s32.totalorder %s551, 1
          %s553 = scalar_select %p552, %s551, 1
          %s554 = smul.addr %s553, 8
          %s555 = scalar_lea.vmem %s0, %s554
          %s556 = smul.u32 2, %s35
        $region16: #{encoder_forward.1} parent=11 // pred_fallthru
          _
        // Predicated region
        $region17: #{encoder_forward.1} parent=11 // pred_check
          %p557 = pneg %p85
        $region18: #{encoder_forward.1} parent=11 // pred_check_branch
          %559 = sbr.rel (%p557) target = $region20
        $region19: #{encoder_forward.1} parent=11 // pred_region
          _
        $region20: #{encoder_forward.1} parent=11 // pred_fallthru
          _
        // Predicated region
        $region21: #{encoder_forward.1} parent=11 // pred_check
          %p560 = pneg %p111
        $region22: #{encoder_forward.1} parent=11 // pred_check_branch
          %562 = sbr.rel (%p560) target = $region24
        $region23: #{encoder_forward.1} parent=11 // pred_region
          %s563 = smul.u32 2, %s35
          %p564 = scmp.lt.s32.totalorder %s563, 1
          %s565 = scalar_select %p564, %s563, 1
          %s566 = scalar_lea.vmem %s2, %s565
          %s567 = smul.u32 2, %s35
        $region24: #{encoder_forward.1} parent=11 // pred_fallthru
          _
        // Predicated region
        $region25: #{encoder_forward.1} parent=11 // pred_check
          %p568 = pneg %p132
        $region26: #{encoder_forward.1} parent=11 // pred_check_branch
          %570 = sbr.rel (%p568) target = $region28
        $region27: #{encoder_forward.1} parent=11 // pred_region
          _
        $region28: #{encoder_forward.1} parent=11 // pred_fallthru
          _
        // Predicated region
        $region29: #{encoder_forward.1} parent=11 // pred_check
          %p571 = pneg %p153
        $region30: #{encoder_forward.1} parent=11 // pred_check_branch
          %573 = sbr.rel (%p571) target = $region32
        $region31: #{encoder_forward.1} parent=11 // pred_region
          _
        $region32: #{encoder_forward.1} parent=11 // pred_fallthru
          _
        // Predicated region
        $region33: #{encoder_forward.1} parent=11 // pred_check
          %p574 = pneg %p174
        $region34: #{encoder_forward.1} parent=11 // pred_check_branch
          %576 = sbr.rel (%p574) target = $region36
        $region35: #{encoder_forward.1} parent=11 // pred_region
          _
        $region36: #{encoder_forward.1} parent=11 // pred_fallthru
          _
        // Predicated region
        $region37: #{encoder_forward.1} parent=11 // pred_check
          %p577 = pneg %p195
        $region38: #{encoder_forward.1} parent=11 // pred_check_branch
          %579 = sbr.rel (%p577) target = $region40
        $region39: #{encoder_forward.1} parent=11 // pred_region
          _
        $region40: #{encoder_forward.1} parent=11 // pred_fallthru
          _
      $region12: #{encoder_forward.1} parent=5 // pred_fallthru
        _
      %p580 = scmp.lt.s32.totalorder %s26, 2
      // Predicated region
      $region41: #{encoder_forward.1} parent=5 // pred_check
        %p581 = pneg %p580
      $region42: #{encoder_forward.1} parent=5 // pred_check_branch
        %583 = sbr.rel (%p581) target = $region44
      $region43: #{encoder_forward.1} parent=5 // pred_region
        // Predicated region
        $region45: #{encoder_forward.1} parent=43 // pred_check
          %p584 = pneg %p215
        $region46: #{encoder_forward.1} parent=43 // pred_check_branch
          %586 = sbr.rel (%p584) target = $region48
        $region47: #{encoder_forward.1} parent=43 // pred_region
          %p587 = scmp.lt.s32.totalorder %s34, 1
          %s588 = scalar_select %p587, %s34, 1
          %s589 = smul.addr %s588, 16
          %s590 = smul.addr %s589, 4
          %s591 = scalar_lea.vmem %s7, %s590
        $region48: #{encoder_forward.1} parent=43 // pred_fallthru
          _
        // Predicated region
        $region49: #{encoder_forward.1} parent=43 // pred_check
          %p592 = pneg %p241
        $region50: #{encoder_forward.1} parent=43 // pred_check_branch
          %594 = sbr.rel (%p592) target = $region52
        $region51: #{encoder_forward.1} parent=43 // pred_region
          %p595 = scmp.lt.s32.totalorder %s34, 1
          %s596 = scalar_select %p595, %s34, 1
          %s597 = smul.addr %s596, 2
          %s598 = scalar_lea.vmem %s8, %s597
        $region52: #{encoder_forward.1} parent=43 // pred_fallthru
          _
        // Predicated region
        $region53: #{encoder_forward.1} parent=43 // pred_check
          %p599 = pneg %p267
        $region54: #{encoder_forward.1} parent=43 // pred_check_branch
          %601 = sbr.rel (%p599) target = $region56
        $region55: #{encoder_forward.1} parent=43 // pred_region
          %p602 = scmp.lt.s32.totalorder %s34, 1
          %s603 = scalar_select %p602, %s34, 1
          %s604 = smul.addr %s603, 8
          %s605 = smul.addr %s604, 4
          %s606 = scalar_lea.vmem %s9, %s605
        $region56: #{encoder_forward.1} parent=43 // pred_fallthru
          _
        // Predicated region
        $region57: #{encoder_forward.1} parent=43 // pred_check
          %p607 = pneg %p293
        $region58: #{encoder_forward.1} parent=43 // pred_check_branch
          %609 = sbr.rel (%p607) target = $region60
        $region59: #{encoder_forward.1} parent=43 // pred_region
          %p610 = scmp.lt.s32.totalorder %s34, 1
          %s611 = scalar_select %p610, %s34, 1
          %s612 = scalar_lea.vmem %s10, %s611
        $region60: #{encoder_forward.1} parent=43 // pred_fallthru
          _
        // Predicated region
        $region61: #{encoder_forward.1} parent=43 // pred_check
          %p613 = pneg %p319
        $region62: #{encoder_forward.1} parent=43 // pred_check_branch
          %615 = sbr.rel (%p613) target = $region64
        $region63: #{encoder_forward.1} parent=43 // pred_region
          %p616 = scmp.lt.s32.totalorder %s34, 1
          %s617 = scalar_select %p616, %s34, 1
          %s618 = scalar_lea.vmem %s11, %s617
        $region64: #{encoder_forward.1} parent=43 // pred_fallthru
          _
        // Predicated region
        $region65: #{encoder_forward.1} parent=43 // pred_check
          %p619 = pneg %p345
        $region66: #{encoder_forward.1} parent=43 // pred_check_branch
          %621 = sbr.rel (%p619) target = $region68
        $region67: #{encoder_forward.1} parent=43 // pred_region
          %p622 = scmp.lt.s32.totalorder %s34, 1
          %s623 = scalar_select %p622, %s34, 1
          %s624 = scalar_lea.vmem %s12, %s623
        $region68: #{encoder_forward.1} parent=43 // pred_fallthru
          _
        // Predicated region
        $region69: #{encoder_forward.1} parent=43 // pred_check
          %p625 = pneg %p371
        $region70: #{encoder_forward.1} parent=43 // pred_check_branch
          %627 = sbr.rel (%p625) target = $region72
        $region71: #{encoder_forward.1} parent=43 // pred_region
          %p628 = scmp.lt.s32.totalorder %s34, 1
          %s629 = scalar_select %p628, %s34, 1
          %s630 = smul.addr %s629, 8
          %s631 = smul.addr %s630, 4
          %s632 = scalar_lea.vmem %s13, %s631
        $region72: #{encoder_forward.1} parent=43 // pred_fallthru
          _
        // Predicated region
        $region73: #{encoder_forward.1} parent=43 // pred_check
          %p633 = pneg %p397
        $region74: #{encoder_forward.1} parent=43 // pred_check_branch
          %635 = sbr.rel (%p633) target = $region76
        $region75: #{encoder_forward.1} parent=43 // pred_region
          %p636 = scmp.lt.s32.totalorder %s34, 1
          %s637 = scalar_select %p636, %s34, 1
          %s638 = scalar_lea.vmem %s14, %s637
        $region76: #{encoder_forward.1} parent=43 // pred_fallthru
          _
        // Predicated region
        $region77: #{encoder_forward.1} parent=43 // pred_check
          %p639 = pneg %p423
        $region78: #{encoder_forward.1} parent=43 // pred_check_branch
          %641 = sbr.rel (%p639) target = $region80
        $region79: #{encoder_forward.1} parent=43 // pred_region
          %p642 = scmp.lt.s32.totalorder %s34, 1
          %s643 = scalar_select %p642, %s34, 1
          %s644 = smul.addr %s643, 16
          %s645 = smul.addr %s644, 4
          %s646 = scalar_lea.vmem %s15, %s645
        $region80: #{encoder_forward.1} parent=43 // pred_fallthru
          _
        // Predicated region
        $region81: #{encoder_forward.1} parent=43 // pred_check
          %p647 = pneg %p449
        $region82: #{encoder_forward.1} parent=43 // pred_check_branch
          %649 = sbr.rel (%p647) target = $region84
        $region83: #{encoder_forward.1} parent=43 // pred_region
          %p650 = scmp.lt.s32.totalorder %s34, 1
          %s651 = scalar_select %p650, %s34, 1
          %s652 = scalar_lea.vmem %s16, %s651
        $region84: #{encoder_forward.1} parent=43 // pred_fallthru
          _
        // Predicated region
        $region85: #{encoder_forward.1} parent=43 // pred_check
          %p653 = pneg %p475
        $region86: #{encoder_forward.1} parent=43 // pred_check_branch
          %655 = sbr.rel (%p653) target = $region88
        $region87: #{encoder_forward.1} parent=43 // pred_region
          %p656 = scmp.lt.s32.totalorder %s34, 1
          %s657 = scalar_select %p656, %s34, 1
          %s658 = scalar_lea.vmem %s17, %s657
        $region88: #{encoder_forward.1} parent=43 // pred_fallthru
          _
        // Predicated region
        $region89: #{encoder_forward.1} parent=43 // pred_check
          %p659 = pneg %p501
        $region90: #{encoder_forward.1} parent=43 // pred_check_branch
          %661 = sbr.rel (%p659) target = $region92
        $region91: #{encoder_forward.1} parent=43 // pred_region
          %p662 = scmp.lt.s32.totalorder %s34, 1
          %s663 = scalar_select %p662, %s34, 1
          %s664 = scalar_lea.vmem %s18, %s663
        $region92: #{encoder_forward.1} parent=43 // pred_fallthru
          _
      $region44: #{encoder_forward.1} parent=5 // pred_fallthru
        _
      %p665 = scmp.le.s32.totalorder 1, %s26
      %p666 = scmp.lt.s32.totalorder %s26, 3
      %p667 = pnand %p665, %p666
      %p668 = pneg %p667
      // Predicated region
      $region93: #{encoder_forward.1} parent=5 // pred_check
        _
      $region94: #{encoder_forward.1} parent=5 // pred_check_branch
        %670 = sbr.rel (%p667) target = $region96
      $region95: #{encoder_forward.1} parent=5 // pred_region
        %s671 = ssub.s32 %s26, 1
        %s672 = smul.u32 2, %s35
        %p673 = scmp.lt.s32.totalorder %s672, 1
        %s674 = scalar_select %p673, %s672, 1
        %s675 = smul.addr %s674, 8
        %s676 = scalar_lea.vmem %s0, %s675
        %p677 = pneg %p64
        %p678 = pneg %p61
        %p679 = pneg %p85
        %p680 = pneg %p82
        %s681 = smul.u32 2, %s35
        %p682 = scmp.lt.s32.totalorder %s681, 1
        %s683 = scalar_select %p682, %s681, 1
        %s684 = scalar_lea.vmem %s2, %s683
        %p685 = pneg %p111
        %p686 = pneg %p108
        %p687 = pneg %p132
        %p688 = pneg %p129
        %p689 = pneg %p153
        %p690 = pneg %p150
        %p691 = pneg %p174
        %p692 = pneg %p171
        %p693 = pneg %p195
        %p694 = pneg %p192
        %p695 = scmp.lt.s32.totalorder %s36, 1
        %s696 = scalar_select %p695, %s36, 1
        %s697 = smul.addr %s696, 16
        %s698 = smul.addr %s697, 4
        %s699 = scalar_lea.vmem %s7, %s698
        %p700 = pneg %p221
        %p701 = pneg %p218
        %p702 = scmp.lt.s32.totalorder %s36, 1
        %s703 = scalar_select %p702, %s36, 1
        %s704 = smul.addr %s703, 2
        %s705 = scalar_lea.vmem %s8, %s704
        %p706 = pneg %p247
        %p707 = pneg %p244
        %p708 = scmp.lt.s32.totalorder %s36, 1
        %s709 = scalar_select %p708, %s36, 1
        %s710 = smul.addr %s709, 8
        %s711 = smul.addr %s710, 4
        %s712 = scalar_lea.vmem %s9, %s711
        %p713 = pneg %p273
        %p714 = pneg %p270
        %p715 = scmp.lt.s32.totalorder %s36, 1
        %s716 = scalar_select %p715, %s36, 1
        %s717 = scalar_lea.vmem %s10, %s716
        %p718 = pneg %p299
        %p719 = pneg %p296
        %p720 = scmp.lt.s32.totalorder %s36, 1
        %s721 = scalar_select %p720, %s36, 1
        %s722 = scalar_lea.vmem %s11, %s721
        %p723 = pneg %p325
        %p724 = pneg %p322
        %p725 = scmp.lt.s32.totalorder %s36, 1
        %s726 = scalar_select %p725, %s36, 1
        %s727 = scalar_lea.vmem %s12, %s726
        %p728 = pneg %p351
        %p729 = pneg %p348
        %p730 = scmp.lt.s32.totalorder %s36, 1
        %s731 = scalar_select %p730, %s36, 1
        %s732 = smul.addr %s731, 8
        %s733 = smul.addr %s732, 4
        %s734 = scalar_lea.vmem %s13, %s733
        %p735 = pneg %p377
        %p736 = pneg %p374
        %p737 = scmp.lt.s32.totalorder %s36, 1
        %s738 = scalar_select %p737, %s36, 1
        %s739 = scalar_lea.vmem %s14, %s738
        %p740 = pneg %p403
        %p741 = pneg %p400
        %p742 = scmp.lt.s32.totalorder %s36, 1
        %s743 = scalar_select %p742, %s36, 1
        %s744 = smul.addr %s743, 16
        %s745 = smul.addr %s744, 4
        %s746 = scalar_lea.vmem %s15, %s745
        %p747 = pneg %p429
        %p748 = pneg %p426
        %p749 = scmp.lt.s32.totalorder %s36, 1
        %s750 = scalar_select %p749, %s36, 1
        %s751 = scalar_lea.vmem %s16, %s750
        %p752 = pneg %p455
        %p753 = pneg %p452
        %p754 = scmp.lt.s32.totalorder %s36, 1
        %s755 = scalar_select %p754, %s36, 1
        %s756 = scalar_lea.vmem %s17, %s755
        %p757 = pneg %p481
        %p758 = pneg %p478
        %p759 = scmp.lt.s32.totalorder %s36, 1
        %s760 = scalar_select %p759, %s36, 1
        %s761 = scalar_lea.vmem %s18, %s760
        %p762 = pneg %p507
        %p763 = pneg %p504
        %p764 = pneg %p533
        %p765 = pneg %p530
        %s766 = smul.u32 2, %s35
        %p767 = scmp.lt.s32.totalorder %s766, 1
        %s768 = scalar_select %p767, %s766, 1
        %s769 = smul.addr %s768, 8
        %s770 = scalar_lea.vmem %s0, %s769
        %s771 = smul.u32 2, %s35
        %s772 = smul.u32 2, %s35
        %p773 = scmp.lt.s32.totalorder %s772, 1
        %s774 = scalar_select %p773, %s772, 1
        %s775 = scalar_lea.vmem %s2, %s774
        %s776 = smul.u32 2, %s35
        %p777 = scmp.lt.s32.totalorder %s36, 1
        %s778 = scalar_select %p777, %s36, 1
        %s779 = smul.addr %s778, 16
        %s780 = smul.addr %s779, 4
        %s781 = scalar_lea.vmem %s7, %s780
        %p782 = scmp.lt.s32.totalorder %s36, 1
        %s783 = scalar_select %p782, %s36, 1
        %s784 = smul.addr %s783, 2
        %s785 = scalar_lea.vmem %s8, %s784
        %p786 = scmp.lt.s32.totalorder %s36, 1
        %s787 = scalar_select %p786, %s36, 1
        %s788 = smul.addr %s787, 8
        %s789 = smul.addr %s788, 4
        %s790 = scalar_lea.vmem %s9, %s789
        %p791 = scmp.lt.s32.totalorder %s36, 1
        %s792 = scalar_select %p791, %s36, 1
        %s793 = scalar_lea.vmem %s10, %s792
        %p794 = scmp.lt.s32.totalorder %s36, 1
        %s795 = scalar_select %p794, %s36, 1
        %s796 = scalar_lea.vmem %s11, %s795
        %p797 = scmp.lt.s32.totalorder %s36, 1
        %s798 = scalar_select %p797, %s36, 1
        %s799 = scalar_lea.vmem %s12, %s798
        %p800 = scmp.lt.s32.totalorder %s36, 1
        %s801 = scalar_select %p800, %s36, 1
        %s802 = smul.addr %s801, 8
        %s803 = smul.addr %s802, 4
        %s804 = scalar_lea.vmem %s13, %s803
        %p805 = scmp.lt.s32.totalorder %s36, 1
        %s806 = scalar_select %p805, %s36, 1
        %s807 = scalar_lea.vmem %s14, %s806
        %p808 = scmp.lt.s32.totalorder %s36, 1
        %s809 = scalar_select %p808, %s36, 1
        %s810 = smul.addr %s809, 16
        %s811 = smul.addr %s810, 4
        %s812 = scalar_lea.vmem %s15, %s811
        %p813 = scmp.lt.s32.totalorder %s36, 1
        %s814 = scalar_select %p813, %s36, 1
        %s815 = scalar_lea.vmem %s16, %s814
        %p816 = scmp.lt.s32.totalorder %s36, 1
        %s817 = scalar_select %p816, %s36, 1
        %s818 = scalar_lea.vmem %s17, %s817
        %p819 = scmp.lt.s32.totalorder %s36, 1
        %s820 = scalar_select %p819, %s36, 1
        %s821 = scalar_lea.vmem %s18, %s820
        %s822 = smul.u32 2, %s35
        %p824 = scmp.eq.s32.totalorder %s36, 0
        // Predicated region
        $region97: #{encoder_forward.1} parent=95 // pred_check
          %p825 = pneg %p824
        $region98: #{encoder_forward.1} parent=95 // pred_check_branch
          %827 = sbr.rel (%p825) target = $region100
        $region99: #{encoder_forward.1} parent=95 // pred_region
          %v828 = vld [vmem:[%s770] sm:$0xff]
          %v829 = vld [vmem:[%s770 + $0x8] sm:$0xff]
          %v830 = vpack.c.bf16 %v829, %v828
          %v831 = vld [vmem:[%s3] sm:$0xf]
          %v832 = vld [vmem:[%s3 + $0x4] sm:$0xf]
          %v833 = vld [vmem:[%s3 + $0x8] sm:$0xf]
          %v834 = vld [vmem:[%s3 + $0xc] sm:$0xf]
          %v835 = vld [vmem:[%s4] sm:$0x1]
          %v837 = vlaneseq
          %v838 = vshrl.u32 %v837, 7
          %v839 = vsub.s32 0, %v838
          %v840 = vrot.slane %v835, %v839
          %v846 = vunpack.c.l.b16 %v831
          %v847 = vunpack.c.l.b16 %v832
          %v848 = vunpack.c.l.b16 %v833
          %v849 = vunpack.c.l.b16 %v834
          %v850 = vpack.c.b16 %v847, %v846
          %v851 = vpack.c.b16 %v849, %v848
          %vm854 = vcmask 261120
          %v856 = vsel %vm854, %v830, 0
          %858 = vmatprep.subr.bf16.mxu0 0
          %859 = vmatpush1.bf16.msra.mxu0 %v850
          %860 = vmatprep.subr.bf16.mxu0 0
          %861 = vmatpush1.bf16.msra.mxu0 %v851
          %862 = vmatprep.subr.bf16.mxu0 0
          %863 = vmatpush1.bf16.msra.mxu0 0
          %864 = vmatprep.subr.bf16.mxu0 0
          %865 = vmatpush1.bf16.msra.mxu0 0
          %866 = vmatprep.subr.bf16.mxu0 0
          %867 = vmatpush1.bf16.msra.mxu0 0
          %868 = vmatprep.subr.bf16.mxu0 0
          %869 = vmatpush1.bf16.msra.mxu0 0
          %870 = vmatprep.subr.bf16.mxu0 0
          %871 = vmatpush1.bf16.msra.mxu0 0
          %872 = vmatprep.subr.bf16.mxu0 0
          %873 = vmatpush1.bf16.msra.mxu0 0
          %874 = vmatprep.subr.bf16.mxu0 0
          %875 = vmatpush1.bf16.msra.mxu0 0
          %876 = vmatprep.subr.bf16.mxu0 0
          %877 = vmatpush1.bf16.msra.mxu0 0
          %878 = vmatprep.subr.bf16.mxu0 0
          %879 = vmatpush1.bf16.msra.mxu0 0
          %880 = vmatprep.subr.bf16.mxu0 0
          %881 = vmatpush1.bf16.msra.mxu0 0
          %882 = vmatprep.subr.bf16.mxu0 0
          %883 = vmatpush1.bf16.msra.mxu0 0
          %884 = vmatprep.subr.bf16.mxu0 0
          %885 = vmatpush1.bf16.msra.mxu0 0
          %886 = vmatprep.subr.bf16.mxu0 0
          %887 = vmatpush1.bf16.msra.mxu0 0
          %888 = vmatprep.subr.bf16.mxu0 0
          %889 = vmatpush1.bf16.msra.mxu0 0
          %890 = vmatprep.mubr.bf16.mxu0 0
          %891 = vmatmul.mubr.bf16.gmra.mrb[0].mxu0 %v856
          %v892 = vpop.f32.mrb[0].mxu0
          %v893 = vadd.f32 %v840, %v892
          %v894 = vpop.f32.mrb[0].mxu0
          %v895 = vpop.f32.mrb[0].mxu0
          %v896 = vadd.f32 %v840, %v895
          %v897 = vpop.f32.mrb[0].mxu0
          %898 = vdwg.mxu0
          %v899 = vmax.f32 %v893, 0.0
          %v900 = vmax.f32 %v896, 0.0
          %v901 = vld [vmem:[%s5] sm:$0x1]
          %v902 = vld [vmem:[%s6] sm:$0x1]
          %vm903 = vcmask 523264
          %v904 = vsel %vm903, %v899, 0.0
          %905 = vadd.xlane.f32.xlu0 %v904
          %v906 = vpop.xlane.xlu0 %905
          %v907 = vsel %vm903, %v900, 0.0
          %908 = vadd.xlane.f32.xlu0 %v907
          %v909 = vpop.xlane.xlu0 %908
          %v910 = vrcp.pop 64.0
          %v911 = vmul.f32 %v906, %v910
          %v912 = vmul.f32 %v909, %v910
          %v913 = vsub.f32 %v899, %v911
          %v914 = vsub.f32 %v900, %v912
          %v915 = vmul.f32 %v913, %v913
          %v916 = vmul.f32 %v914, %v914
          %v917 = vsel %vm903, %v915, 0.0
          %918 = vadd.xlane.f32.xlu0 %v917
          %v919 = vpop.xlane.xlu0 %918
          %v920 = vsel %vm903, %v916, 0.0
          %921 = vadd.xlane.f32.xlu0 %v920
          %v922 = vpop.xlane.xlu0 %921
          %v923 = vmul.f32 %v919, %v910
          %v924 = vmul.f32 %v922, %v910
          %v925 = vadd.f32 %v923, 1e-05
          %v926 = vadd.f32 %v924, 1e-05
          %v927 = vrsqrt.pop %v925
          %v928 = vrsqrt.pop %v926
          %v929 = vmul.f32 %v913, %v927
          %v930 = vmul.f32 %v914, %v928
          %v932 = vlaneseq
          %v933 = vshrl.u32 %v932, 7
          %v934 = vsub.s32 0, %v933
          %v935 = vrot.slane %v901, %v934
          %v937 = vmul.f32 %v929, %v935
          %v938 = vmul.f32 %v930, %v935
          %v940 = vlaneseq
          %v941 = vshrl.u32 %v940, 7
          %v942 = vsub.s32 0, %v941
          %v943 = vrot.slane %v902, %v942
          %v945 = vadd.f32 %v937, %v943
          %v946 = vadd.f32 %v938, %v943
          %947 = vst.msk [vmem:[#allocation2] sm:$0xff] %vm903, %v945
          %948 = vst.msk [vmem:[#allocation2 + $0x8] sm:$0xff] %vm903, %v946
        $region100: #{encoder_forward.1} parent=95 // pred_fallthru
          _
        %v949 = vld [vmem:[#allocation2] sm:$0xff]
        %v950 = vld [vmem:[#allocation2 + $0x8] sm:$0xff]
        %v951 = vld [vmem:[%s1] sm:$0xff]
        %v952 = vadd.f32 %v949, %v951
        %v953 = vadd.f32 %v950, %v951
        %v954 = vld [vmem:[%s775] sm:$0x1]
        %v955 = vld [vmem:[%s775 + $0x1] sm:$0x1]
        %v956 = vpack.c.bf16 %v953, %v952
        %v957 = vld [vmem:[%s781] sm:$0xff]
        %v958 = vld [vmem:[%s781 + $0x8] sm:$0xff]
        %v959 = vld [vmem:[%s781 + $0x10] sm:$0xff]
        %v960 = vld [vmem:[%s781 + $0x18] sm:$0xff]
        %v961 = vld [vmem:[%s781 + $0x20] sm:$0xff]
        %v962 = vld [vmem:[%s781 + $0x28] sm:$0xff]
        %v963 = vld [vmem:[%s781 + $0x30] sm:$0xff]
        %v964 = vld [vmem:[%s781 + $0x38] sm:$0xff]
        %v965 = vld [vmem:[%s785] sm:$0x3]
        %v967 = vlaneseq
        %v968 = vshrl.u32 %v967, 7
        %v969 = vsub.s32 0, %v968
        %v970 = vrot.slane %v965, %v969
        %v971 = vlaneseq
        %v972 = vshrl.u32 %v971, 7
        %v973 = vsub.s32 1, %v972
        %v974 = vrot.slane %v965, %v973
        %v985 = vunpack.c.l.b16 %v957
        %v986 = vunpack.c.h.b16 %v957
        %v987 = vunpack.c.l.b16 %v958
        %v988 = vunpack.c.h.b16 %v958
        %v989 = vunpack.c.l.b16 %v959
        %v990 = vunpack.c.h.b16 %v959
        %v991 = vunpack.c.l.b16 %v960
        %v992 = vunpack.c.h.b16 %v960
        %v993 = vunpack.c.l.b16 %v961
        %v994 = vunpack.c.h.b16 %v961
        %v995 = vunpack.c.l.b16 %v962
        %v996 = vunpack.c.h.b16 %v962
        %v997 = vunpack.c.l.b16 %v963
        %v998 = vunpack.c.h.b16 %v963
        %v999 = vunpack.c.l.b16 %v964
        %v1000 = vunpack.c.h.b16 %v964
        %v1001 = vpack.c.b16 %v987, %v985
        %v1002 = vpack.c.b16 %v988, %v986
        %v1003 = vpack.c.b16 %v991, %v989
        %v1004 = vpack.c.b16 %v992, %v990
        %v1005 = vpack.c.b16 %v995, %v993
        %v1006 = vpack.c.b16 %v996, %v994
        %v1007 = vpack.c.b16 %v999, %v997
        %v1008 = vpack.c.b16 %v1000, %v998
        %vm1017 = vcmask 523264
        %v1019 = vsel %vm1017, %v956, 0
        %1021 = vmatprep.subr.bf16.mxu0 %v1002
        %1022 = vmatpush1.bf16.msra.mxu0 %v1001
        %1023 = vmatprep.subr.bf16.mxu0 %v1004
        %1024 = vmatpush1.bf16.msra.mxu0 %v1003
        %1025 = vmatprep.subr.bf16.mxu0 %v1006
        %1026 = vmatpush1.bf16.msra.mxu0 %v1005
        %1027 = vmatprep.subr.bf16.mxu0 %v1008
        %1028 = vmatpush1.bf16.msra.mxu0 %v1007
        %1029 = vmatprep.subr.bf16.mxu0 0
        %1030 = vmatpush1.bf16.msra.mxu0 0
        %1031 = vmatprep.subr.bf16.mxu0 0
        %1032 = vmatpush1.bf16.msra.mxu0 0
        %1033 = vmatprep.subr.bf16.mxu0 0
        %1034 = vmatpush1.bf16.msra.mxu0 0
        %1035 = vmatprep.subr.bf16.mxu0 0
        %1036 = vmatpush1.bf16.msra.mxu0 0
        %1037 = vmatprep.subr.bf16.mxu0 0
        %1038 = vmatpush1.bf16.msra.mxu0 0
        %1039 = vmatprep.subr.bf16.mxu0 0
        %1040 = vmatpush1.bf16.msra.mxu0 0
        %1041 = vmatprep.subr.bf16.mxu0 0
        %1042 = vmatpush1.bf16.msra.mxu0 0
        %1043 = vmatprep.subr.bf16.mxu0 0
        %1044 = vmatpush1.bf16.msra.mxu0 0
        %1045 = vmatprep.subr.bf16.mxu0 0
        %1046 = vmatpush1.bf16.msra.mxu0 0
        %1047 = vmatprep.subr.bf16.mxu0 0
        %1048 = vmatpush1.bf16.msra.mxu0 0
        %1049 = vmatprep.subr.bf16.mxu0 0
        %1050 = vmatpush1.bf16.msra.mxu0 0
        %1051 = vmatprep.subr.bf16.mxu0 0
        %1052 = vmatpush1.bf16.msra.mxu0 0
        %1053 = vmatprep.mubr.bf16.mxu0 0
        %1054 = vmatmul.mubr.bf16.gmra.mrb[0].mxu0 %v1019
        %v1055 = vpop.f32.mrb[0].mxu0
        %v1056 = vadd.f32 %v970, %v1055
        %v1057 = vpop.f32.mrb[0].mxu0
        %v1058 = vadd.f32 %v974, %v1057
        %v1059 = vpop.f32.mrb[0].mxu0
        %v1060 = vadd.f32 %v970, %v1059
        %v1061 = vpop.f32.mrb[0].mxu0
        %v1062 = vadd.f32 %v974, %v1061
        %1063 = vdwg.mxu0
        %v1064 = vpack.c.bf16 %v1060, %v1056
        %v1065 = vpack.c.bf16 %v1062, %v1058
        %v1067 = vunpack.c.l.b16 %v1064
        %v1068 = vunpack.c.h.b16 %v1064
        %v1069 = vpack.c.b16 %v1067, %v1067
        %v1070 = vpack.c.b16 %v1068, %v1068
        %v1072 = vunpack.c.l.b16 %v1065
        %v1073 = vunpack.c.h.b16 %v1065
        %v1074 = vpack.c.b16 %v1072, %v1072
        %v1075 = vpack.c.b16 %v1073, %v1073
        %1076 = vrot.lane.b32.xlu0 %v1069, 64
        %v1077 = vpop.permute.xlu0 %1076
        %vm1078 = vcmask 130048
        %v1080 = vsel %vm1078, %v1069, 0
        %v1083 = vsel %vm1078, %v1077, 0
        %1085 = vmatprep.subr.bf16.mxu0 0
        %1086 = vmatpush1.bf16.xpose.msra.mxu0 %v1083
        %1087 = vmatprep.subr.bf16.mxu0 0
        %1088 = vmatpush1.bf16.xpose.msra.mxu0 0
        %1089 = vmatprep.subr.bf16.mxu0 0
        %1090 = vmatpush1.bf16.xpose.msra.mxu0 0
        %1091 = vmatprep.subr.bf16.mxu0 0
        %1092 = vmatpush1.bf16.xpose.msra.mxu0 0
        %1093 = vmatprep.subr.bf16.mxu0 0
        %1094 = vmatpush1.bf16.xpose.msra.mxu0 0
        %1095 = vmatprep.subr.bf16.mxu0 0
        %1096 = vmatpush1.bf16.xpose.msra.mxu0 0
        %1097 = vmatprep.subr.bf16.mxu0 0
        %1098 = vmatpush1.bf16.xpose.msra.mxu0 0
        %1099 = vmatprep.subr.bf16.mxu0 0
        %1100 = vmatpush1.bf16.xpose.msra.mxu0 0
        %1101 = vmatprep.subr.bf16.mxu0 0
        %1102 = vmatpush1.bf16.xpose.msra.mxu0 0
        %1103 = vmatprep.subr.bf16.mxu0 0
        %1104 = vmatpush1.bf16.xpose.msra.mxu0 0
        %1105 = vmatprep.subr.bf16.mxu0 0
        %1106 = vmatpush1.bf16.xpose.msra.mxu0 0
        %1107 = vmatprep.subr.bf16.mxu0 0
        %1108 = vmatpush1.bf16.xpose.msra.mxu0 0
        %1109 = vmatprep.subr.bf16.mxu0 0
        %1110 = vmatpush1.bf16.xpose.msra.mxu0 0
        %1111 = vmatprep.subr.bf16.mxu0 0
        %1112 = vmatpush1.bf16.xpose.msra.mxu0 0
        %1113 = vmatprep.subr.bf16.mxu0 0
        %1114 = vmatpush1.bf16.xpose.msra.mxu0 0
        %1115 = vmatprep.subr.bf16.mxu0 0
        %1116 = vmatpush1.bf16.xpose.msra.mxu0 0
        %1117 = vmatprep.mubr.bf16.mxu0 0
        %1118 = vmatmul.mubr.bf16.gmra.mrb[0].mxu0 %v1080
        %v1119 = vpop.f32.mrb[0].mxu0
        %v1120 = vadd.f32 0.0, %v1119
        %v1121 = vpop.f32.mrb[0].mxu0
        %v1122 = vpop.f32.mrb[0].mxu0
        %v1123 = vpop.f32.mrb[0].mxu0
        %1124 = vdwg.mxu0
        %1125 = vrot.lane.b32.xlu0 %v1070, 64
        %v1126 = vpop.permute.xlu0 %1125
        %v1128 = vsel %vm1078, %v1070, 0
        %v1131 = vsel %vm1078, %v1126, 0
        %1133 = vmatprep.subr.bf16.mxu0 0
        %1134 = vmatpush1.bf16.xpose.msra.mxu0 %v1131
        %1135 = vmatprep.subr.bf16.mxu0 0
        %1136 = vmatpush1.bf16.xpose.msra.mxu0 0
        %1137 = vmatprep.subr.bf16.mxu0 0
        %1138 = vmatpush1.bf16.xpose.msra.mxu0 0
        %1139 = vmatprep.subr.bf16.mxu0 0
        %1140 = vmatpush1.bf16.xpose.msra.mxu0 0
        %1141 = vmatprep.subr.bf16.mxu0 0
        %1142 = vmatpush1.bf16.xpose.msra.mxu0 0
        %1143 = vmatprep.subr.bf16.mxu0 0
        %1144 = vmatpush1.bf16.xpose.msra.mxu0 0
        %1145 = vmatprep.subr.bf16.mxu0 0
        %1146 = vmatpush1.bf16.xpose.msra.mxu0 0
        %1147 = vmatprep.subr.bf16.mxu0 0
        %1148 = vmatpush1.bf16.xpose.msra.mxu0 0
        %1149 = vmatprep.subr.bf16.mxu0 0
        %1150 = vmatpush1.bf16.xpose.msra.mxu0 0
        %1151 = vmatprep.subr.bf16.mxu0 0
        %1152 = vmatpush1.bf16.xpose.msra.mxu0 0
        %1153 = vmatprep.subr.bf16.mxu0 0
        %1154 = vmatpush1.bf16.xpose.msra.mxu0 0
        %1155 = vmatprep.subr.bf16.mxu0 0
        %1156 = vmatpush1.bf16.xpose.msra.mxu0 0
        %1157 = vmatprep.subr.bf16.mxu0 0
        %1158 = vmatpush1.bf16.xpose.msra.mxu0 0
        %1159 = vmatprep.subr.bf16.mxu0 0
        %1160 = vmatpush1.bf16.xpose.msra.mxu0 0
        %1161 = vmatprep.subr.bf16.mxu0 0
        %1162 = vmatpush1.bf16.xpose.msra.mxu0 0
        %1163 = vmatprep.subr.bf16.mxu0 0
        %1164 = vmatpush1.bf16.xpose.msra.mxu0 0
        %1165 = vmatprep.mubr.bf16.mxu0 0
        %1166 = vmatmul.mubr.bf16.gmra.mrb[0].mxu0 %v1128
        %v1167 = vpop.f32.mrb[0].mxu0
        %v1168 = vadd.f32 0.0, %v1167
        %v1169 = vpop.f32.mrb[0].mxu0
        %v1170 = vpop.f32.mrb[0].mxu0
        %v1171 = vpop.f32.mrb[0].mxu0
        %1172 = vdwg.mxu0
        %v1173 = vmul.f32 %v1120, 0.25
        %v1174 = vmul.f32 %v1168, 0.25
        %v1177 = vlaneseq
        %v1178 = vshrl.u32 %v1177, 7
        %v1179 = vsub.s32 0, %v1178
        %v1180 = vrot.slane %v954, %v1179
        %v1181 = vlaneseq
        %v1182 = vshrl.u32 %v1181, 7
        %v1183 = vsub.s32 0, %v1182
        %v1184 = vrot.slane %v955, %v1183
        %v1187 = vadd.f32 %v1173, %v1180
        %v1188 = vadd.f32 %v1174, %v1184
        %vm1189 = vcmask 64512
        %v1190 = vsel %vm1189, %v1187, -inf
        %1191 = vmax.xlane.f32.xlu0 %v1190
        %v1192 = vpop.xlane.xlu0 %1191
        %v1193 = vsel %vm1189, %v1188, -inf
        %1194 = vmax.xlane.f32.xlu0 %v1193
        %v1195 = vpop.xlane.xlu0 %1194
        %v1196 = vsub.f32 %v1187, %v1192
        %v1197 = vsub.f32 %v1188, %v1195
        %v1198 = vmul.f32 %v1196, 1.442695
        %v1199 = vpow.pop %v1198
        %v1200 = vmul.f32 %v1197, 1.442695
        %v1201 = vpow.pop %v1200
        %v1202 = vsel %vm1189, %v1199, 0.0
        %1203 = vadd.xlane.f32.xlu0 %v1202
        %v1204 = vpop.xlane.xlu0 %1203
        %v1205 = vsel %vm1189, %v1201, 0.0
        %1206 = vadd.xlane.f32.xlu0 %v1205
        %v1207 = vpop.xlane.xlu0 %1206
        %v1208 = vrcp.pop %v1204
        %v1209 = vrcp.pop %v1207
        %v1210 = vmul.f32 %v1199, %v1208
        %v1211 = vmul.f32 %v1201, %v1209
        %v1212 = vpack.c.bf16 %v1210, %v1210
        %v1213 = vpack.c.bf16 %v1211, %v1211
        %v1215 = vsel %vm1189, %v1212, 0
        %vm1217 = vcmask 1043456
        %v1219 = vsel %vm1217, %v1074, 0
        %1221 = vmatprep.subr.bf16.mxu0 0
        %1222 = vmatpush1.bf16.msra.mxu0 %v1219
        %1223 = vmatprep.subr.bf16.mxu0 0
        %1224 = vmatpush1.bf16.msra.mxu0 0
        %1225 = vmatprep.subr.bf16.mxu0 0
        %1226 = vmatpush1.bf16.msra.mxu0 0
        %1227 = vmatprep.subr.bf16.mxu0 0
        %1228 = vmatpush1.bf16.msra.mxu0 0
        %1229 = vmatprep.subr.bf16.mxu0 0
        %1230 = vmatpush1.bf16.msra.mxu0 0
        %1231 = vmatprep.subr.bf16.mxu0 0
        %1232 = vmatpush1.bf16.msra.mxu0 0
        %1233 = vmatprep.subr.bf16.mxu0 0
        %1234 = vmatpush1.bf16.msra.mxu0 0
        %1235 = vmatprep.subr.bf16.mxu0 0
        %1236 = vmatpush1.bf16.msra.mxu0 0
        %1237 = vmatprep.subr.bf16.mxu0 0
        %1238 = vmatpush1.bf16.msra.mxu0 0
        %1239 = vmatprep.subr.bf16.mxu0 0
        %1240 = vmatpush1.bf16.msra.mxu0 0
        %1241 = vmatprep.subr.bf16.mxu0 0
        %1242 = vmatpush1.bf16.msra.mxu0 0
        %1243 = vmatprep.subr.bf16.mxu0 0
        %1244 = vmatpush1.bf16.msra.mxu0 0
        %1245 = vmatprep.subr.bf16.mxu0 0
        %1246 = vmatpush1.bf16.msra.mxu0 0
        %1247 = vmatprep.subr.bf16.mxu0 0
        %1248 = vmatpush1.bf16.msra.mxu0 0
        %1249 = vmatprep.subr.bf16.mxu0 0
        %1250 = vmatpush1.bf16.msra.mxu0 0
        %1251 = vmatprep.subr.bf16.mxu0 0
        %1252 = vmatpush1.bf16.msra.mxu0 0
        %1253 = vmatprep.mubr.bf16.mxu0 0
        %1254 = vmatmul.mubr.bf16.gmra.mrb[0].mxu0 %v1215
        %v1255 = vpop.f32.mrb[0].mxu0
        %v1256 = vadd.f32 0.0, %v1255
        %v1257 = vpop.f32.mrb[0].mxu0
        %v1258 = vpop.f32.mrb[0].mxu0
        %v1259 = vpop.f32.mrb[0].mxu0
        %1260 = vdwg.mxu0
        %v1262 = vsel %vm1189, %v1213, 0
        %v1265 = vsel %vm1217, %v1075, 0
        %1267 = vmatprep.subr.bf16.mxu0 0
        %1268 = vmatpush1.bf16.msra.mxu0 %v1265
        %1269 = vmatprep.subr.bf16.mxu0 0
        %1270 = vmatpush1.bf16.msra.mxu0 0
        %1271 = vmatprep.subr.bf16.mxu0 0
        %1272 = vmatpush1.bf16.msra.mxu0 0
        %1273 = vmatprep.subr.bf16.mxu0 0
        %1274 = vmatpush1.bf16.msra.mxu0 0
        %1275 = vmatprep.subr.bf16.mxu0 0
        %1276 = vmatpush1.bf16.msra.mxu0 0
        %1277 = vmatprep.subr.bf16.mxu0 0
        %1278 = vmatpush1.bf16.msra.mxu0 0
        %1279 = vmatprep.subr.bf16.mxu0 0
        %1280 = vmatpush1.bf16.msra.mxu0 0
        %1281 = vmatprep.subr.bf16.mxu0 0
        %1282 = vmatpush1.bf16.msra.mxu0 0
        %1283 = vmatprep.subr.bf16.mxu0 0
        %1284 = vmatpush1.bf16.msra.mxu0 0
        %1285 = vmatprep.subr.bf16.mxu0 0
        %1286 = vmatpush1.bf16.msra.mxu0 0
        %1287 = vmatprep.subr.bf16.mxu0 0
        %1288 = vmatpush1.bf16.msra.mxu0 0
        %1289 = vmatprep.subr.bf16.mxu0 0
        %1290 = vmatpush1.bf16.msra.mxu0 0
        %1291 = vmatprep.subr.bf16.mxu0 0
        %1292 = vmatpush1.bf16.msra.mxu0 0
        %1293 = vmatprep.subr.bf16.mxu0 0
        %1294 = vmatpush1.bf16.msra.mxu0 0
        %1295 = vmatprep.subr.bf16.mxu0 0
        %1296 = vmatpush1.bf16.msra.mxu0 0
        %1297 = vmatprep.subr.bf16.mxu0 0
        %1298 = vmatpush1.bf16.msra.mxu0 0
        %1299 = vmatprep.mubr.bf16.mxu0 0
        %1300 = vmatmul.mubr.bf16.gmra.mrb[0].mxu0 %v1262
        %v1301 = vpop.f32.mrb[0].mxu0
        %v1302 = vadd.f32 0.0, %v1301
        %v1303 = vpop.f32.mrb[0].mxu0
        %v1304 = vpop.f32.mrb[0].mxu0
        %v1305 = vpop.f32.mrb[0].mxu0
        %1306 = vdwg.mxu0
        %1307 = vrot.lane.b32.xlu0 %v1069, 112
        %v1308 = vpop.permute.xlu0 %1307
        %1309 = vrot.lane.b32.xlu0 %v1069, 48
        %v1310 = vpop.permute.xlu0 %1309
        %v1312 = vsel %vm1078, %v1308, 0
        %v1315 = vsel %vm1078, %v1310, 0
        %1317 = vmatprep.subr.bf16.mxu0 0
        %1318 = vmatpush1.bf16.xpose.msra.mxu0 %v1315
        %1319 = vmatprep.subr.bf16.mxu0 0
        %1320 = vmatpush1.bf16.xpose.msra.mxu0 0
        %1321 = vmatprep.subr.bf16.mxu0 0
        %1322 = vmatpush1.bf16.xpose.msra.mxu0 0
        %1323 = vmatprep.subr.bf16.mxu0 0
        %1324 = vmatpush1.bf16.xpose.msra.mxu0 0
        %1325 = vmatprep.subr.bf16.mxu0 0
        %1326 = vmatpush1.bf16.xpose.msra.mxu0 0
        %1327 = vmatprep.subr.bf16.mxu0 0
        %1328 = vmatpush1.bf16.xpose.msra.mxu0 0
        %1329 = vmatprep.subr.bf16.mxu0 0
        %1330 = vmatpush1.bf16.xpose.msra.mxu0 0
        %1331 = vmatprep.subr.bf16.mxu0 0
        %1332 = vmatpush1.bf16.xpose.msra.mxu0 0
        %1333 = vmatprep.subr.bf16.mxu0 0
        %1334 = vmatpush1.bf16.xpose.msra.mxu0 0
        %1335 = vmatprep.subr.bf16.mxu0 0
        %1336 = vmatpush1.bf16.xpose.msra.mxu0 0
        %1337 = vmatprep.subr.bf16.mxu0 0
        %1338 = vmatpush1.bf16.xpose.msra.mxu0 0
        %1339 = vmatprep.subr.bf16.mxu0 0
        %1340 = vmatpush1.bf16.xpose.msra.mxu0 0
        %1341 = vmatprep.subr.bf16.mxu0 0
        %1342 = vmatpush1.bf16.xpose.msra.mxu0 0
        %1343 = vmatprep.subr.bf16.mxu0 0
        %1344 = vmatpush1.bf16.xpose.msra.mxu0 0
        %1345 = vmatprep.subr.bf16.mxu0 0
        %1346 = vmatpush1.bf16.xpose.msra.mxu0 0
        %1347 = vmatprep.subr.bf16.mxu0 0
        %1348 = vmatpush1.bf16.xpose.msra.mxu0 0
        %1349 = vmatprep.mubr.bf16.mxu0 0
        %1350 = vmatmul.mubr.bf16.gmra.mrb[0].mxu0 %v1312
        %v1351 = vpop.f32.mrb[0].mxu0
        %v1352 = vadd.f32 0.0, %v1351
        %v1353 = vpop.f32.mrb[0].mxu0
        %v1354 = vpop.f32.mrb[0].mxu0
        %v1355 = vpop.f32.mrb[0].mxu0
        %1356 = vdwg.mxu0
        %1357 = vrot.lane.b32.xlu0 %v1070, 112
        %v1358 = vpop.permute.xlu0 %1357
        %1359 = vrot.lane.b32.xlu0 %v1070, 48
        %v1360 = vpop.permute.xlu0 %1359
        %v1362 = vsel %vm1078, %v1358, 0
        %v1365 = vsel %vm1078, %v1360, 0
        %1367 = vmatprep.subr.bf16.mxu0 0
        %1368 = vmatpush1.bf16.xpose.msra.mxu0 %v1365
        %1369 = vmatprep.subr.bf16.mxu0 0
        %1370 = vmatpush1.bf16.xpose.msra.mxu0 0
        %1371 = vmatprep.subr.bf16.mxu0 0
        %1372 = vmatpush1.bf16.xpose.msra.mxu0 0
        %1373 = vmatprep.subr.bf16.mxu0 0
        %1374 = vmatpush1.bf16.xpose.msra.mxu0 0
        %1375 = vmatprep.subr.bf16.mxu0 0
        %1376 = vmatpush1.bf16.xpose.msra.mxu0 0
        %1377 = vmatprep.subr.bf16.mxu0 0
        %1378 = vmatpush1.bf16.xpose.msra.mxu0 0
        %1379 = vmatprep.subr.bf16.mxu0 0
        %1380 = vmatpush1.bf16.xpose.msra.mxu0 0
        %1381 = vmatprep.subr.bf16.mxu0 0
        %1382 = vmatpush1.bf16.xpose.msra.mxu0 0
        %1383 = vmatprep.subr.bf16.mxu0 0
        %1384 = vmatpush1.bf16.xpose.msra.mxu0 0
        %1385 = vmatprep.subr.bf16.mxu0 0
        %1386 = vmatpush1.bf16.xpose.msra.mxu0 0
        %1387 = vmatprep.subr.bf16.mxu0 0
        %1388 = vmatpush1.bf16.xpose.msra.mxu0 0
        %1389 = vmatprep.subr.bf16.mxu0 0
        %1390 = vmatpush1.bf16.xpose.msra.mxu0 0
        %1391 = vmatprep.subr.bf16.mxu0 0
        %1392 = vmatpush1.bf16.xpose.msra.mxu0 0
        %1393 = vmatprep.subr.bf16.mxu0 0
        %1394 = vmatpush1.bf16.xpose.msra.mxu0 0
        %1395 = vmatprep.subr.bf16.mxu0 0
        %1396 = vmatpush1.bf16.xpose.msra.mxu0 0
        %1397 = vmatprep.subr.bf16.mxu0 0
        %1398 = vmatpush1.bf16.xpose.msra.mxu0 0
        %1399 = vmatprep.mubr.bf16.mxu0 0
        %1400 = vmatmul.mubr.bf16.gmra.mrb[0].mxu0 %v1362
        %v1401 = vpop.f32.mrb[0].mxu0
        %v1402 = vadd.f32 0.0, %v1401
        %v1403 = vpop.f32.mrb[0].mxu0
        %v1404 = vpop.f32.mrb[0].mxu0
        %v1405 = vpop.f32.mrb[0].mxu0
        %1406 = vdwg.mxu0
        %v1407 = vmul.f32 %v1352, 0.25
        %v1408 = vmul.f32 %v1402, 0.25
        %v1409 = vadd.f32 %v1407, %v1180
        %v1410 = vadd.f32 %v1408, %v1184
        %v1411 = vsel %vm1189, %v1409, -inf
        %1412 = vmax.xlane.f32.xlu0 %v1411
        %v1413 = vpop.xlane.xlu0 %1412
        %v1414 = vsel %vm1189, %v1410, -inf
        %1415 = vmax.xlane.f32.xlu0 %v1414
        %v1416 = vpop.xlane.xlu0 %1415
        %v1417 = vsub.f32 %v1409, %v1413
        %v1418 = vsub.f32 %v1410, %v1416
        %v1419 = vmul.f32 %v1417, 1.442695
        %v1420 = vpow.pop %v1419
        %v1421 = vmul.f32 %v1418, 1.442695
        %v1422 = vpow.pop %v1421
        %v1423 = vsel %vm1189, %v1420, 0.0
        %1424 = vadd.xlane.f32.xlu0 %v1423
        %v1425 = vpop.xlane.xlu0 %1424
        %v1426 = vsel %vm1189, %v1422, 0.0
        %1427 = vadd.xlane.f32.xlu0 %v1426
        %v1428 = vpop.xlane.xlu0 %1427
        %v1429 = vrcp.pop %v1425
        %v1430 = vrcp.pop %v1428
        %v1431 = vmul.f32 %v1420, %v1429
        %v1432 = vmul.f32 %v1422, %v1430
        %v1433 = vpack.c.bf16 %v1431, %v1431
        %v1434 = vpack.c.bf16 %v1432, %v1432
        %1435 = vrot.lane.b32.xlu0 %v1074, 112
        %v1436 = vpop.permute.xlu0 %1435
        %v1438 = vsel %vm1189, %v1433, 0
        %v1441 = vsel %vm1217, %v1436, 0
        %1443 = vmatprep.subr.bf16.mxu0 0
        %1444 = vmatpush1.bf16.msra.mxu0 %v1441
        %1445 = vmatprep.subr.bf16.mxu0 0
        %1446 = vmatpush1.bf16.msra.mxu0 0
        %1447 = vmatprep.subr.bf16.mxu0 0
        %1448 = vmatpush1.bf16.msra.mxu0 0
        %1449 = vmatprep.subr.bf16.mxu0 0
        %1450 = vmatpush1.bf16.msra.mxu0 0
        %1451 = vmatprep.subr.bf16.mxu0 0
        %1452 = vmatpush1.bf16.msra.mxu0 0
        %1453 = vmatprep.subr.bf16.mxu0 0
        %1454 = vmatpush1.bf16.msra.mxu0 0
        %1455 = vmatprep.subr.bf16.mxu0 0
        %1456 = vmatpush1.bf16.msra.mxu0 0
        %1457 = vmatprep.subr.bf16.mxu0 0
        %1458 = vmatpush1.bf16.msra.mxu0 0
        %1459 = vmatprep.subr.bf16.mxu0 0
        %1460 = vmatpush1.bf16.msra.mxu0 0
        %1461 = vmatprep.subr.bf16.mxu0 0
        %1462 = vmatpush1.bf16.msra.mxu0 0
        %1463 = vmatprep.subr.bf16.mxu0 0
        %1464 = vmatpush1.bf16.msra.mxu0 0
        %1465 = vmatprep.subr.bf16.mxu0 0
        %1466 = vmatpush1.bf16.msra.mxu0 0
        %1467 = vmatprep.subr.bf16.mxu0 0
        %1468 = vmatpush1.bf16.msra.mxu0 0
        %1469 = vmatprep.subr.bf16.mxu0 0
        %1470 = vmatpush1.bf16.msra.mxu0 0
        %1471 = vmatprep.subr.bf16.mxu0 0
        %1472 = vmatpush1.bf16.msra.mxu0 0
        %1473 = vmatprep.subr.bf16.mxu0 0
        %1474 = vmatpush1.bf16.msra.mxu0 0
        %1475 = vmatprep.mubr.bf16.mxu0 0
        %1476 = vmatmul.mubr.bf16.gmra.mrb[0].mxu0 %v1438
        %v1477 = vpop.f32.mrb[0].mxu0
        %v1478 = vadd.f32 0.0, %v1477
        %v1479 = vpop.f32.mrb[0].mxu0
        %v1480 = vpop.f32.mrb[0].mxu0
        %v1481 = vpop.f32.mrb[0].mxu0
        %1482 = vdwg.mxu0
        %1483 = vrot.lane.b32.xlu0 %v1075, 112
        %v1484 = vpop.permute.xlu0 %1483
        %v1486 = vsel %vm1189, %v1434, 0
        %v1489 = vsel %vm1217, %v1484, 0
        %1491 = vmatprep.subr.bf16.mxu0 0
        %1492 = vmatpush1.bf16.msra.mxu0 %v1489
        %1493 = vmatprep.subr.bf16.mxu0 0
        %1494 = vmatpush1.bf16.msra.mxu0 0
        %1495 = vmatprep.subr.bf16.mxu0 0
        %1496 = vmatpush1.bf16.msra.mxu0 0
        %1497 = vmatprep.subr.bf16.mxu0 0
        %1498 = vmatpush1.bf16.msra.mxu0 0
        %1499 = vmatprep.subr.bf16.mxu0 0
        %1500 = vmatpush1.bf16.msra.mxu0 0
        %1501 = vmatprep.subr.bf16.mxu0 0
        %1502 = vmatpush1.bf16.msra.mxu0 0
        %1503 = vmatprep.subr.bf16.mxu0 0
        %1504 = vmatpush1.bf16.msra.mxu0 0
        %1505 = vmatprep.subr.bf16.mxu0 0
        %1506 = vmatpush1.bf16.msra.mxu0 0
        %1507 = vmatprep.subr.bf16.mxu0 0
        %1508 = vmatpush1.bf16.msra.mxu0 0
        %1509 = vmatprep.subr.bf16.mxu0 0
        %1510 = vmatpush1.bf16.msra.mxu0 0
        %1511 = vmatprep.subr.bf16.mxu0 0
        %1512 = vmatpush1.bf16.msra.mxu0 0
        %1513 = vmatprep.subr.bf16.mxu0 0
        %1514 = vmatpush1.bf16.msra.mxu0 0
        %1515 = vmatprep.subr.bf16.mxu0 0
        %1516 = vmatpush1.bf16.msra.mxu0 0
        %1517 = vmatprep.subr.bf16.mxu0 0
        %1518 = vmatpush1.bf16.msra.mxu0 0
        %1519 = vmatprep.subr.bf16.mxu0 0
        %1520 = vmatpush1.bf16.msra.mxu0 0
        %1521 = vmatprep.subr.bf16.mxu0 0
        %1522 = vmatpush1.bf16.msra.mxu0 0
        %1523 = vmatprep.mubr.bf16.mxu0 0
        %1524 = vmatmul.mubr.bf16.gmra.mrb[0].mxu0 %v1486
        %v1525 = vpop.f32.mrb[0].mxu0
        %v1526 = vadd.f32 0.0, %v1525
        %v1527 = vpop.f32.mrb[0].mxu0
        %v1528 = vpop.f32.mrb[0].mxu0
        %v1529 = vpop.f32.mrb[0].mxu0
        %1530 = vdwg.mxu0
        %1531 = vrot.lane.b32.xlu0 %v1069, 96
        %v1532 = vpop.permute.xlu0 %1531
        %1533 = vrot.lane.b32.xlu0 %v1069, 32
        %v1534 = vpop.permute.xlu0 %1533
        %v1536 = vsel %vm1078, %v1532, 0
        %v1539 = vsel %vm1078, %v1534, 0
        %1541 = vmatprep.subr.bf16.mxu0 0
        %1542 = vmatpush1.bf16.xpose.msra.mxu0 %v1539
        %1543 = vmatprep.subr.bf16.mxu0 0
        %1544 = vmatpush1.bf16.xpose.msra.mxu0 0
        %1545 = vmatprep.subr.bf16.mxu0 0
        %1546 = vmatpush1.bf16.xpose.msra.mxu0 0
        %1547 = vmatprep.subr.bf16.mxu0 0
        %1548 = vmatpush1.bf16.xpose.msra.mxu0 0
        %1549 = vmatprep.subr.bf16.mxu0 0
        %1550 = vmatpush1.bf16.xpose.msra.mxu0 0
        %1551 = vmatprep.subr.bf16.mxu0 0
        %1552 = vmatpush1.bf16.xpose.msra.mxu0 0
        %1553 = vmatprep.subr.bf16.mxu0 0
        %1554 = vmatpush1.bf16.xpose.msra.mxu0 0
        %1555 = vmatprep.subr.bf16.mxu0 0
        %1556 = vmatpush1.bf16.xpose.msra.mxu0 0
        %1557 = vmatprep.subr.bf16.mxu0 0
        %1558 = vmatpush1.bf16.xpose.msra.mxu0 0
        %1559 = vmatprep.subr.bf16.mxu0 0
        %1560 = vmatpush1.bf16.xpose.msra.mxu0 0
        %1561 = vmatprep.subr.bf16.mxu0 0
        %1562 = vmatpush1.bf16.xpose.msra.mxu0 0
        %1563 = vmatprep.subr.bf16.mxu0 0
        %1564 = vmatpush1.bf16.xpose.msra.mxu0 0
        %1565 = vmatprep.subr.bf16.mxu0 0
        %1566 = vmatpush1.bf16.xpose.msra.mxu0 0
        %1567 = vmatprep.subr.bf16.mxu0 0
        %1568 = vmatpush1.bf16.xpose.msra.mxu0 0
        %1569 = vmatprep.subr.bf16.mxu0 0
        %1570 = vmatpush1.bf16.xpose.msra.mxu0 0
        %1571 = vmatprep.subr.bf16.mxu0 0
        %1572 = vmatpush1.bf16.xpose.msra.mxu0 0
        %1573 = vmatprep.mubr.bf16.mxu0 0
        %1574 = vmatmul.mubr.bf16.gmra.mrb[0].mxu0 %v1536
        %v1575 = vpop.f32.mrb[0].mxu0
        %v1576 = vadd.f32 0.0, %v1575
        %v1577 = vpop.f32.mrb[0].mxu0
        %v1578 = vpop.f32.mrb[0].mxu0
        %v1579 = vpop.f32.mrb[0].mxu0
        %1580 = vdwg.mxu0
        %1581 = vrot.lane.b32.xlu0 %v1070, 96
        %v1582 = vpop.permute.xlu0 %1581
        %1583 = vrot.lane.b32.xlu0 %v1070, 32
        %v1584 = vpop.permute.xlu0 %1583
        %v1586 = vsel %vm1078, %v1582, 0
        %v1589 = vsel %vm1078, %v1584, 0
        %1591 = vmatprep.subr.bf16.mxu0 0
        %1592 = vmatpush1.bf16.xpose.msra.mxu0 %v1589
        %1593 = vmatprep.subr.bf16.mxu0 0
        %1594 = vmatpush1.bf16.xpose.msra.mxu0 0
        %1595 = vmatprep.subr.bf16.mxu0 0
        %1596 = vmatpush1.bf16.xpose.msra.mxu0 0
        %1597 = vmatprep.subr.bf16.mxu0 0
        %1598 = vmatpush1.bf16.xpose.msra.mxu0 0
        %1599 = vmatprep.subr.bf16.mxu0 0
        %1600 = vmatpush1.bf16.xpose.msra.mxu0 0
        %1601 = vmatprep.subr.bf16.mxu0 0
        %1602 = vmatpush1.bf16.xpose.msra.mxu0 0
        %1603 = vmatprep.subr.bf16.mxu0 0
        %1604 = vmatpush1.bf16.xpose.msra.mxu0 0
        %1605 = vmatprep.subr.bf16.mxu0 0
        %1606 = vmatpush1.bf16.xpose.msra.mxu0 0
        %1607 = vmatprep.subr.bf16.mxu0 0
        %1608 = vmatpush1.bf16.xpose.msra.mxu0 0
        %1609 = vmatprep.subr.bf16.mxu0 0
        %1610 = vmatpush1.bf16.xpose.msra.mxu0 0
        %1611 = vmatprep.subr.bf16.mxu0 0
        %1612 = vmatpush1.bf16.xpose.msra.mxu0 0
        %1613 = vmatprep.subr.bf16.mxu0 0
        %1614 = vmatpush1.bf16.xpose.msra.mxu0 0
        %1615 = vmatprep.subr.bf16.mxu0 0
        %1616 = vmatpush1.bf16.xpose.msra.mxu0 0
        %1617 = vmatprep.subr.bf16.mxu0 0
        %1618 = vmatpush1.bf16.xpose.msra.mxu0 0
        %1619 = vmatprep.subr.bf16.mxu0 0
        %1620 = vmatpush1.bf16.xpose.msra.mxu0 0
        %1621 = vmatprep.subr.bf16.mxu0 0
        %1622 = vmatpush1.bf16.xpose.msra.mxu0 0
        %1623 = vmatprep.mubr.bf16.mxu0 0
        %1624 = vmatmul.mubr.bf16.gmra.mrb[0].mxu0 %v1586
        %v1625 = vpop.f32.mrb[0].mxu0
        %v1626 = vadd.f32 0.0, %v1625
        %v1627 = vpop.f32.mrb[0].mxu0
        %v1628 = vpop.f32.mrb[0].mxu0
        %v1629 = vpop.f32.mrb[0].mxu0
        %1630 = vdwg.mxu0
        %v1631 = vmul.f32 %v1576, 0.25
        %v1632 = vmul.f32 %v1626, 0.25
        %v1633 = vadd.f32 %v1631, %v1180
        %v1634 = vadd.f32 %v1632, %v1184
        %v1635 = vsel %vm1189, %v1633, -inf
        %1636 = vmax.xlane.f32.xlu0 %v1635
        %v1637 = vpop.xlane.xlu0 %1636
        %v1638 = vsel %vm1189, %v1634, -inf
        %1639 = vmax.xlane.f32.xlu0 %v1638
        %v1640 = vpop.xlane.xlu0 %1639
        %v1641 = vsub.f32 %v1633, %v1637
        %v1642 = vsub.f32 %v1634, %v1640
        %v1643 = vmul.f32 %v1641, 1.442695
        %v1644 = vpow.pop %v1643
        %v1645 = vmul.f32 %v1642, 1.442695
        %v1646 = vpow.pop %v1645
        %v1647 = vsel %vm1189, %v1644, 0.0
        %1648 = vadd.xlane.f32.xlu0 %v1647
        %v1649 = vpop.xlane.xlu0 %1648
        %v1650 = vsel %vm1189, %v1646, 0.0
        %1651 = vadd.xlane.f32.xlu0 %v1650
        %v1652 = vpop.xlane.xlu0 %1651
        %v1653 = vrcp.pop %v1649
        %v1654 = vrcp.pop %v1652
        %v1655 = vmul.f32 %v1644, %v1653
        %v1656 = vmul.f32 %v1646, %v1654
        %v1657 = vpack.c.bf16 %v1655, %v1655
        %v1658 = vpack.c.bf16 %v1656, %v1656
        %1659 = vrot.lane.b32.xlu0 %v1074, 96
        %v1660 = vpop.permute.xlu0 %1659
        %v1662 = vsel %vm1189, %v1657, 0
        %v1665 = vsel %vm1217, %v1660, 0
        %1667 = vmatprep.subr.bf16.mxu0 0
        %1668 = vmatpush1.bf16.msra.mxu0 %v1665
        %1669 = vmatprep.subr.bf16.mxu0 0
        %1670 = vmatpush1.bf16.msra.mxu0 0
        %1671 = vmatprep.subr.bf16.mxu0 0
        %1672 = vmatpush1.bf16.msra.mxu0 0
        %1673 = vmatprep.subr.bf16.mxu0 0
        %1674 = vmatpush1.bf16.msra.mxu0 0
        %1675 = vmatprep.subr.bf16.mxu0 0
        %1676 = vmatpush1.bf16.msra.mxu0 0
        %1677 = vmatprep.subr.bf16.mxu0 0
        %1678 = vmatpush1.bf16.msra.mxu0 0
        %1679 = vmatprep.subr.bf16.mxu0 0
        %1680 = vmatpush1.bf16.msra.mxu0 0
        %1681 = vmatprep.subr.bf16.mxu0 0
        %1682 = vmatpush1.bf16.msra.mxu0 0
        %1683 = vmatprep.subr.bf16.mxu0 0
        %1684 = vmatpush1.bf16.msra.mxu0 0
        %1685 = vmatprep.subr.bf16.mxu0 0
        %1686 = vmatpush1.bf16.msra.mxu0 0
        %1687 = vmatprep.subr.bf16.mxu0 0
        %1688 = vmatpush1.bf16.msra.mxu0 0
        %1689 = vmatprep.subr.bf16.mxu0 0
        %1690 = vmatpush1.bf16.msra.mxu0 0
        %1691 = vmatprep.subr.bf16.mxu0 0
        %1692 = vmatpush1.bf16.msra.mxu0 0
        %1693 = vmatprep.subr.bf16.mxu0 0
        %1694 = vmatpush1.bf16.msra.mxu0 0
        %1695 = vmatprep.subr.bf16.mxu0 0
        %1696 = vmatpush1.bf16.msra.mxu0 0
        %1697 = vmatprep.subr.bf16.mxu0 0
        %1698 = vmatpush1.bf16.msra.mxu0 0
        %1699 = vmatprep.mubr.bf16.mxu0 0
        %1700 = vmatmul.mubr.bf16.gmra.mrb[0].mxu0 %v1662
        %v1701 = vpop.f32.mrb[0].mxu0
        %v1702 = vadd.f32 0.0, %v1701
        %v1703 = vpop.f32.mrb[0].mxu0
        %v1704 = vpop.f32.mrb[0].mxu0
        %v1705 = vpop.f32.mrb[0].mxu0
        %1706 = vdwg.mxu0
        %1707 = vrot.lane.b32.xlu0 %v1075, 96
        %v1708 = vpop.permute.xlu0 %1707
        %v1710 = vsel %vm1189, %v1658, 0
        %v1713 = vsel %vm1217, %v1708, 0
        %1715 = vmatprep.subr.bf16.mxu0 0
        %1716 = vmatpush1.bf16.msra.mxu0 %v1713
        %1717 = vmatprep.subr.bf16.mxu0 0
        %1718 = vmatpush1.bf16.msra.mxu0 0
        %1719 = vmatprep.subr.bf16.mxu0 0
        %1720 = vmatpush1.bf16.msra.mxu0 0
        %1721 = vmatprep.subr.bf16.mxu0 0
        %1722 = vmatpush1.bf16.msra.mxu0 0
        %1723 = vmatprep.subr.bf16.mxu0 0
        %1724 = vmatpush1.bf16.msra.mxu0 0
        %1725 = vmatprep.subr.bf16.mxu0 0
        %1726 = vmatpush1.bf16.msra.mxu0 0
        %1727 = vmatprep.subr.bf16.mxu0 0
        %1728 = vmatpush1.bf16.msra.mxu0 0
        %1729 = vmatprep.subr.bf16.mxu0 0
        %1730 = vmatpush1.bf16.msra.mxu0 0
        %1731 = vmatprep.subr.bf16.mxu0 0
        %1732 = vmatpush1.bf16.msra.mxu0 0
        %1733 = vmatprep.subr.bf16.mxu0 0
        %1734 = vmatpush1.bf16.msra.mxu0 0
        %1735 = vmatprep.subr.bf16.mxu0 0
        %1736 = vmatpush1.bf16.msra.mxu0 0
        %1737 = vmatprep.subr.bf16.mxu0 0
        %1738 = vmatpush1.bf16.msra.mxu0 0
        %1739 = vmatprep.subr.bf16.mxu0 0
        %1740 = vmatpush1.bf16.msra.mxu0 0
        %1741 = vmatprep.subr.bf16.mxu0 0
        %1742 = vmatpush1.bf16.msra.mxu0 0
        %1743 = vmatprep.subr.bf16.mxu0 0
        %1744 = vmatpush1.bf16.msra.mxu0 0
        %1745 = vmatprep.subr.bf16.mxu0 0
        %1746 = vmatpush1.bf16.msra.mxu0 0
        %1747 = vmatprep.mubr.bf16.mxu0 0
        %1748 = vmatmul.mubr.bf16.gmra.mrb[0].mxu0 %v1710
        %v1749 = vpop.f32.mrb[0].mxu0
        %v1750 = vadd.f32 0.0, %v1749
        %v1751 = vpop.f32.mrb[0].mxu0
        %v1752 = vpop.f32.mrb[0].mxu0
        %v1753 = vpop.f32.mrb[0].mxu0
        %1754 = vdwg.mxu0
        %1755 = vrot.lane.b32.xlu0 %v1069, 80
        %v1756 = vpop.permute.xlu0 %1755
        %1757 = vrot.lane.b32.xlu0 %v1069, 16
        %v1758 = vpop.permute.xlu0 %1757
        %v1760 = vsel %vm1078, %v1756, 0
        %v1763 = vsel %vm1078, %v1758, 0
        %1765 = vmatprep.subr.bf16.mxu0 0
        %1766 = vmatpush1.bf16.xpose.msra.mxu0 %v1763
        %1767 = vmatprep.subr.bf16.mxu0 0
        %1768 = vmatpush1.bf16.xpose.msra.mxu0 0
        %1769 = vmatprep.subr.bf16.mxu0 0
        %1770 = vmatpush1.bf16.xpose.msra.mxu0 0
        %1771 = vmatprep.subr.bf16.mxu0 0
        %1772 = vmatpush1.bf16.xpose.msra.mxu0 0
        %1773 = vmatprep.subr.bf16.mxu0 0
        %1774 = vmatpush1.bf16.xpose.msra.mxu0 0
        %1775 = vmatprep.subr.bf16.mxu0 0
        %1776 = vmatpush1.bf16.xpose.msra.mxu0 0
        %1777 = vmatprep.subr.bf16.mxu0 0
        %1778 = vmatpush1.bf16.xpose.msra.mxu0 0
        %1779 = vmatprep.subr.bf16.mxu0 0
        %1780 = vmatpush1.bf16.xpose.msra.mxu0 0
        %1781 = vmatprep.subr.bf16.mxu0 0
        %1782 = vmatpush1.bf16.xpose.msra.mxu0 0
        %1783 = vmatprep.subr.bf16.mxu0 0
        %1784 = vmatpush1.bf16.xpose.msra.mxu0 0
        %1785 = vmatprep.subr.bf16.mxu0 0
        %1786 = vmatpush1.bf16.xpose.msra.mxu0 0
        %1787 = vmatprep.subr.bf16.mxu0 0
        %1788 = vmatpush1.bf16.xpose.msra.mxu0 0
        %1789 = vmatprep.subr.bf16.mxu0 0
        %1790 = vmatpush1.bf16.xpose.msra.mxu0 0
        %1791 = vmatprep.subr.bf16.mxu0 0
        %1792 = vmatpush1.bf16.xpose.msra.mxu0 0
        %1793 = vmatprep.subr.bf16.mxu0 0
        %1794 = vmatpush1.bf16.xpose.msra.mxu0 0
        %1795 = vmatprep.subr.bf16.mxu0 0
        %1796 = vmatpush1.bf16.xpose.msra.mxu0 0
        %1797 = vmatprep.mubr.bf16.mxu0 0
        %1798 = vmatmul.mubr.bf16.gmra.mrb[0].mxu0 %v1760
        %v1799 = vpop.f32.mrb[0].mxu0
        %v1800 = vadd.f32 0.0, %v1799
        %v1801 = vpop.f32.mrb[0].mxu0
        %v1802 = vpop.f32.mrb[0].mxu0
        %v1803 = vpop.f32.mrb[0].mxu0
        %1804 = vdwg.mxu0
        %1805 = vrot.lane.b32.xlu0 %v1070, 80
        %v1806 = vpop.permute.xlu0 %1805
        %1807 = vrot.lane.b32.xlu0 %v1070, 16
        %v1808 = vpop.permute.xlu0 %1807
        %v1810 = vsel %vm1078, %v1806, 0
        %v1813 = vsel %vm1078, %v1808, 0
        %1815 = vmatprep.subr.bf16.mxu0 0
        %1816 = vmatpush1.bf16.xpose.msra.mxu0 %v1813
        %1817 = vmatprep.subr.bf16.mxu0 0
        %1818 = vmatpush1.bf16.xpose.msra.mxu0 0
        %1819 = vmatprep.subr.bf16.mxu0 0
        %1820 = vmatpush1.bf16.xpose.msra.mxu0 0
        %1821 = vmatprep.subr.bf16.mxu0 0
        %1822 = vmatpush1.bf16.xpose.msra.mxu0 0
        %1823 = vmatprep.subr.bf16.mxu0 0
        %1824 = vmatpush1.bf16.xpose.msra.mxu0 0
        %1825 = vmatprep.subr.bf16.mxu0 0
        %1826 = vmatpush1.bf16.xpose.msra.mxu0 0
        %1827 = vmatprep.subr.bf16.mxu0 0
        %1828 = vmatpush1.bf16.xpose.msra.mxu0 0
        %1829 = vmatprep.subr.bf16.mxu0 0
        %1830 = vmatpush1.bf16.xpose.msra.mxu0 0
        %1831 = vmatprep.subr.bf16.mxu0 0
        %1832 = vmatpush1.bf16.xpose.msra.mxu0 0
        %1833 = vmatprep.subr.bf16.mxu0 0
        %1834 = vmatpush1.bf16.xpose.msra.mxu0 0
        %1835 = vmatprep.subr.bf16.mxu0 0
        %1836 = vmatpush1.bf16.xpose.msra.mxu0 0
        %1837 = vmatprep.subr.bf16.mxu0 0
        %1838 = vmatpush1.bf16.xpose.msra.mxu0 0
        %1839 = vmatprep.subr.bf16.mxu0 0
        %1840 = vmatpush1.bf16.xpose.msra.mxu0 0
        %1841 = vmatprep.subr.bf16.mxu0 0
        %1842 = vmatpush1.bf16.xpose.msra.mxu0 0
        %1843 = vmatprep.subr.bf16.mxu0 0
        %1844 = vmatpush1.bf16.xpose.msra.mxu0 0
        %1845 = vmatprep.subr.bf16.mxu0 0
        %1846 = vmatpush1.bf16.xpose.msra.mxu0 0
        %1847 = vmatprep.mubr.bf16.mxu0 0
        %1848 = vmatmul.mubr.bf16.gmra.mrb[0].mxu0 %v1810
        %v1849 = vpop.f32.mrb[0].mxu0
        %v1850 = vadd.f32 0.0, %v1849
        %v1851 = vpop.f32.mrb[0].mxu0
        %v1852 = vpop.f32.mrb[0].mxu0
        %v1853 = vpop.f32.mrb[0].mxu0
        %1854 = vdwg.mxu0
        %v1855 = vmul.f32 %v1800, 0.25
        %v1856 = vmul.f32 %v1850, 0.25
        %v1857 = vadd.f32 %v1855, %v1180
        %v1858 = vadd.f32 %v1856, %v1184
        %v1859 = vsel %vm1189, %v1857, -inf
        %1860 = vmax.xlane.f32.xlu0 %v1859
        %v1861 = vpop.xlane.xlu0 %1860
        %v1862 = vsel %vm1189, %v1858, -inf
        %1863 = vmax.xlane.f32.xlu0 %v1862
        %v1864 = vpop.xlane.xlu0 %1863
        %v1865 = vsub.f32 %v1857, %v1861
        %v1866 = vsub.f32 %v1858, %v1864
        %v1867 = vmul.f32 %v1865, 1.442695
        %v1868 = vpow.pop %v1867
        %v1869 = vmul.f32 %v1866, 1.442695
        %v1870 = vpow.pop %v1869
        %v1871 = vsel %vm1189, %v1868, 0.0
        %1872 = vadd.xlane.f32.xlu0 %v1871
        %v1873 = vpop.xlane.xlu0 %1872
        %v1874 = vsel %vm1189, %v1870, 0.0
        %1875 = vadd.xlane.f32.xlu0 %v1874
        %v1876 = vpop.xlane.xlu0 %1875
        %v1877 = vrcp.pop %v1873
        %v1878 = vrcp.pop %v1876
        %v1879 = vmul.f32 %v1868, %v1877
        %v1880 = vmul.f32 %v1870, %v1878
        %v1881 = vpack.c.bf16 %v1879, %v1879
        %v1882 = vpack.c.bf16 %v1880, %v1880
        %1883 = vrot.lane.b32.xlu0 %v1074, 80
        %v1884 = vpop.permute.xlu0 %1883
        %v1886 = vsel %vm1189, %v1881, 0
        %v1889 = vsel %vm1217, %v1884, 0
        %1891 = vmatprep.subr.bf16.mxu0 0
        %1892 = vmatpush1.bf16.msra.mxu0 %v1889
        %1893 = vmatprep.subr.bf16.mxu0 0
        %1894 = vmatpush1.bf16.msra.mxu0 0
        %1895 = vmatprep.subr.bf16.mxu0 0
        %1896 = vmatpush1.bf16.msra.mxu0 0
        %1897 = vmatprep.subr.bf16.mxu0 0
        %1898 = vmatpush1.bf16.msra.mxu0 0
        %1899 = vmatprep.subr.bf16.mxu0 0
        %1900 = vmatpush1.bf16.msra.mxu0 0
        %1901 = vmatprep.subr.bf16.mxu0 0
        %1902 = vmatpush1.bf16.msra.mxu0 0
        %1903 = vmatprep.subr.bf16.mxu0 0
        %1904 = vmatpush1.bf16.msra.mxu0 0
        %1905 = vmatprep.subr.bf16.mxu0 0
        %1906 = vmatpush1.bf16.msra.mxu0 0
        %1907 = vmatprep.subr.bf16.mxu0 0
        %1908 = vmatpush1.bf16.msra.mxu0 0
        %1909 = vmatprep.subr.bf16.mxu0 0
        %1910 = vmatpush1.bf16.msra.mxu0 0
        %1911 = vmatprep.subr.bf16.mxu0 0
        %1912 = vmatpush1.bf16.msra.mxu0 0
        %1913 = vmatprep.subr.bf16.mxu0 0
        %1914 = vmatpush1.bf16.msra.mxu0 0
        %1915 = vmatprep.subr.bf16.mxu0 0
        %1916 = vmatpush1.bf16.msra.mxu0 0
        %1917 = vmatprep.subr.bf16.mxu0 0
        %1918 = vmatpush1.bf16.msra.mxu0 0
        %1919 = vmatprep.subr.bf16.mxu0 0
        %1920 = vmatpush1.bf16.msra.mxu0 0
        %1921 = vmatprep.subr.bf16.mxu0 0
        %1922 = vmatpush1.bf16.msra.mxu0 0
        %1923 = vmatprep.mubr.bf16.mxu0 0
        %1924 = vmatmul.mubr.bf16.gmra.mrb[0].mxu0 %v1886
        %v1925 = vpop.f32.mrb[0].mxu0
        %v1926 = vadd.f32 0.0, %v1925
        %v1927 = vpop.f32.mrb[0].mxu0
        %v1928 = vpop.f32.mrb[0].mxu0
        %v1929 = vpop.f32.mrb[0].mxu0
        %1930 = vdwg.mxu0
        %1931 = vrot.lane.b32.xlu0 %v1075, 80
        %v1932 = vpop.permute.xlu0 %1931
        %v1934 = vsel %vm1189, %v1882, 0
        %v1937 = vsel %vm1217, %v1932, 0
        %1939 = vmatprep.subr.bf16.mxu0 0
        %1940 = vmatpush1.bf16.msra.mxu0 %v1937
        %1941 = vmatprep.subr.bf16.mxu0 0
        %1942 = vmatpush1.bf16.msra.mxu0 0
        %1943 = vmatprep.subr.bf16.mxu0 0
        %1944 = vmatpush1.bf16.msra.mxu0 0
        %1945 = vmatprep.subr.bf16.mxu0 0
        %1946 = vmatpush1.bf16.msra.mxu0 0
        %1947 = vmatprep.subr.bf16.mxu0 0
        %1948 = vmatpush1.bf16.msra.mxu0 0
        %1949 = vmatprep.subr.bf16.mxu0 0
        %1950 = vmatpush1.bf16.msra.mxu0 0
        %1951 = vmatprep.subr.bf16.mxu0 0
        %1952 = vmatpush1.bf16.msra.mxu0 0
        %1953 = vmatprep.subr.bf16.mxu0 0
        %1954 = vmatpush1.bf16.msra.mxu0 0
        %1955 = vmatprep.subr.bf16.mxu0 0
        %1956 = vmatpush1.bf16.msra.mxu0 0
        %1957 = vmatprep.subr.bf16.mxu0 0
        %1958 = vmatpush1.bf16.msra.mxu0 0
        %1959 = vmatprep.subr.bf16.mxu0 0
        %1960 = vmatpush1.bf16.msra.mxu0 0
        %1961 = vmatprep.subr.bf16.mxu0 0
        %1962 = vmatpush1.bf16.msra.mxu0 0
        %1963 = vmatprep.subr.bf16.mxu0 0
        %1964 = vmatpush1.bf16.msra.mxu0 0
        %1965 = vmatprep.subr.bf16.mxu0 0
        %1966 = vmatpush1.bf16.msra.mxu0 0
        %1967 = vmatprep.subr.bf16.mxu0 0
        %1968 = vmatpush1.bf16.msra.mxu0 0
        %1969 = vmatprep.subr.bf16.mxu0 0
        %1970 = vmatpush1.bf16.msra.mxu0 0
        %1971 = vmatprep.mubr.bf16.mxu0 0
        %1972 = vmatmul.mubr.bf16.gmra.mrb[0].mxu0 %v1934
        %v1973 = vpop.f32.mrb[0].mxu0
        %v1974 = vadd.f32 0.0, %v1973
        %v1975 = vpop.f32.mrb[0].mxu0
        %v1976 = vpop.f32.mrb[0].mxu0
        %v1977 = vpop.f32.mrb[0].mxu0
        %1978 = vdwg.mxu0
        %1981 = vrot.lane.b32.xlu0 %v1478, 16
        %v1982 = vpop.permute.xlu0 %1981
        %1983 = vrot.lane.b32.xlu0 %v1526, 16
        %v1984 = vpop.permute.xlu0 %1983
        %1989 = vrot.lane.b32.xlu0 %v1702, 32
        %v1990 = vpop.permute.xlu0 %1989
        %1991 = vrot.lane.b32.xlu0 %v1750, 32
        %v1992 = vpop.permute.xlu0 %1991
        %1997 = vrot.lane.b32.xlu0 %v1926, 48
        %v1998 = vpop.permute.xlu0 %1997
        %1999 = vrot.lane.b32.xlu0 %v1974, 48
        %v2000 = vpop.permute.xlu0 %1999
        %v2003 = vsel %vm1078, %v1256, %v1982
        %v2004 = vsel %vm1078, %v1302, %v1984
        %vm2005 = vcmask 261120
        %v2006 = vsel %vm2005, %v2003, %v1990
        %v2007 = vsel %vm2005, %v2004, %v1992
        %vm2008 = vcmask 392192
        %v2009 = vsel %vm2008, %v2006, %v1998
        %v2010 = vsel %vm2008, %v2007, %v2000
        %v2011 = vpack.c.bf16 %v2010, %v2009
        %v2012 = vld [vmem:[%s790] sm:$0xf]
        %v2013 = vld [vmem:[%s790 + $0x4] sm:$0xf]
        %v2014 = vld [vmem:[%s790 + $0x8] sm:$0xf]
        %v2015 = vld [vmem:[%s790 + $0xc] sm:$0xf]
        %v2016 = vld [vmem:[%s790 + $0x10] sm:$0xf]
        %v2017 = vld [vmem:[%s790 + $0x14] sm:$0xf]
        %v2018 = vld [vmem:[%s790 + $0x18] sm:$0xf]
        %v2019 = vld [vmem:[%s790 + $0x1c] sm:$0xf]
        %v2020 = vld [vmem:[%s793] sm:$0x1]
        %v2022 = vlaneseq
        %v2023 = vshrl.u32 %v2022, 7
        %v2024 = vsub.s32 0, %v2023
        %v2025 = vrot.slane %v2020, %v2024
        %v2035 = vunpack.c.l.b16 %v2012
        %v2036 = vunpack.c.l.b16 %v2013
        %v2037 = vunpack.c.l.b16 %v2014
        %v2038 = vunpack.c.l.b16 %v2015
        %v2039 = vunpack.c.l.b16 %v2016
        %v2040 = vunpack.c.l.b16 %v2017
        %v2041 = vunpack.c.l.b16 %v2018
        %v2042 = vunpack.c.l.b16 %v2019
        %v2043 = vpack.c.b16 %v2036, %v2035
        %v2044 = vpack.c.b16 %v2038, %v2037
        %v2045 = vpack.c.b16 %v2040, %v2039
        %v2046 = vpack.c.b16 %v2042, %v2041
        %v2052 = vsel %vm1017, %v2011, 0
        %2054 = vmatprep.subr.bf16.mxu0 0
        %2055 = vmatpush1.bf16.msra.mxu0 %v2043
        %2056 = vmatprep.subr.bf16.mxu0 0
        %2057 = vmatpush1.bf16.msra.mxu0 %v2044
        %2058 = vmatprep.subr.bf16.mxu0 0
        %2059 = vmatpush1.bf16.msra.mxu0 %v2045
        %2060 = vmatprep.subr.bf16.mxu0 0
        %2061 = vmatpush1.bf16.msra.mxu0 %v2046
        %2062 = vmatprep.subr.bf16.mxu0 0
        %2063 = vmatpush1.bf16.msra.mxu0 0
        %2064 = vmatprep.subr.bf16.mxu0 0
        %2065 = vmatpush1.bf16.msra.mxu0 0
        %2066 = vmatprep.subr.bf16.mxu0 0
        %2067 = vmatpush1.bf16.msra.mxu0 0
        %2068 = vmatprep.subr.bf16.mxu0 0
        %2069 = vmatpush1.bf16.msra.mxu0 0
        %2070 = vmatprep.subr.bf16.mxu0 0
        %2071 = vmatpush1.bf16.msra.mxu0 0
        %2072 = vmatprep.subr.bf16.mxu0 0
        %2073 = vmatpush1.bf16.msra.mxu0 0
        %2074 = vmatprep.subr.bf16.mxu0 0
        %2075 = vmatpush1.bf16.msra.mxu0 0
        %2076 = vmatprep.subr.bf16.mxu0 0
        %2077 = vmatpush1.bf16.msra.mxu0 0
        %2078 = vmatprep.subr.bf16.mxu0 0
        %2079 = vmatpush1.bf16.msra.mxu0 0
        %2080 = vmatprep.subr.bf16.mxu0 0
        %2081 = vmatpush1.bf16.msra.mxu0 0
        %2082 = vmatprep.subr.bf16.mxu0 0
        %2083 = vmatpush1.bf16.msra.mxu0 0
        %2084 = vmatprep.subr.bf16.mxu0 0
        %2085 = vmatpush1.bf16.msra.mxu0 0
        %2086 = vmatprep.mubr.bf16.mxu0 0
        %2087 = vmatmul.mubr.bf16.gmra.mrb[0].mxu0 %v2052
        %v2088 = vpop.f32.mrb[0].mxu0
        %v2089 = vadd.f32 %v2025, %v2088
        %v2090 = vpop.f32.mrb[0].mxu0
        %v2091 = vpop.f32.mrb[0].mxu0
        %v2092 = vadd.f32 %v2025, %v2091
        %v2093 = vpop.f32.mrb[0].mxu0
        %2094 = vdwg.mxu0
        %v2095 = vadd.f32 %v952, %v2089
        %v2096 = vadd.f32 %v953, %v2092
        %v2097 = vld [vmem:[%s796] sm:$0x1]
        %v2098 = vld [vmem:[%s799] sm:$0x1]
        %v2099 = vsel %vm1017, %v2095, 0.0
        %2100 = vadd.xlane.f32.xlu0 %v2099
        %v2101 = vpop.xlane.xlu0 %2100
        %v2102 = vsel %vm1017, %v2096, 0.0
        %2103 = vadd.xlane.f32.xlu0 %v2102
        %v2104 = vpop.xlane.xlu0 %2103
        %v2105 = vrcp.pop 64.0
        %v2106 = vmul.f32 %v2101, %v2105
        %v2107 = vmul.f32 %v2104, %v2105
        %v2108 = vsub.f32 %v2095, %v2106
        %v2109 = vsub.f32 %v2096, %v2107
        %v2110 = vmul.f32 %v2108, %v2108
        %v2111 = vmul.f32 %v2109, %v2109
        %v2112 = vsel %vm1017, %v2110, 0.0
        %2113 = vadd.xlane.f32.xlu0 %v2112
        %v2114 = vpop.xlane.xlu0 %2113
        %v2115 = vsel %vm1017, %v2111, 0.0
        %2116 = vadd.xlane.f32.xlu0 %v2115
        %v2117 = vpop.xlane.xlu0 %2116
        %v2118 = vmul.f32 %v2114, %v2105
        %v2119 = vmul.f32 %v2117, %v2105
        %v2120 = vadd.f32 %v2118, 1e-05
        %v2121 = vadd.f32 %v2119, 1e-05
        %v2122 = vrsqrt.pop %v2120
        %v2123 = vrsqrt.pop %v2121
        %v2124 = vmul.f32 %v2108, %v2122
        %v2125 = vmul.f32 %v2109, %v2123
        %v2127 = vlaneseq
        %v2128 = vshrl.u32 %v2127, 7
        %v2129 = vsub.s32 0, %v2128
        %v2130 = vrot.slane %v2097, %v2129
        %v2132 = vmul.f32 %v2124, %v2130
        %v2133 = vmul.f32 %v2125, %v2130
        %v2135 = vlaneseq
        %v2136 = vshrl.u32 %v2135, 7
        %v2137 = vsub.s32 0, %v2136
        %v2138 = vrot.slane %v2098, %v2137
        %v2140 = vadd.f32 %v2132, %v2138
        %v2141 = vadd.f32 %v2133, %v2138
        %v2142 = vpack.c.bf16 %v2141, %v2140
        %v2143 = vld [vmem:[%s804] sm:$0xf]
        %v2144 = vld [vmem:[%s804 + $0x4] sm:$0xf]
        %v2145 = vld [vmem:[%s804 + $0x8] sm:$0xf]
        %v2146 = vld [vmem:[%s804 + $0xc] sm:$0xf]
        %v2147 = vld [vmem:[%s804 + $0x10] sm:$0xf]
        %v2148 = vld [vmem:[%s804 + $0x14] sm:$0xf]
        %v2149 = vld [vmem:[%s804 + $0x18] sm:$0xf]
        %v2150 = vld [vmem:[%s804 + $0x1c] sm:$0xf]
        %v2151 = vld [vmem:[%s807] sm:$0x1]
        %v2153 = vlaneseq
        %v2154 = vshrl.u32 %v2153, 7
        %v2155 = vsub.s32 0, %v2154
        %v2156 = vrot.slane %v2151, %v2155
        %v2166 = vunpack.c.l.b16 %v2143
        %v2167 = vunpack.c.l.b16 %v2144
        %v2168 = vunpack.c.l.b16 %v2145
        %v2169 = vunpack.c.l.b16 %v2146
        %v2170 = vunpack.c.l.b16 %v2147
        %v2171 = vunpack.c.l.b16 %v2148
        %v2172 = vunpack.c.l.b16 %v2149
        %v2173 = vunpack.c.l.b16 %v2150
        %v2174 = vpack.c.b16 %v2167, %v2166
        %v2175 = vpack.c.b16 %v2169, %v2168
        %v2176 = vpack.c.b16 %v2171, %v2170
        %v2177 = vpack.c.b16 %v2173, %v2172
        %v2183 = vsel %vm1017, %v2142, 0
        %2185 = vmatprep.subr.bf16.mxu0 0
        %2186 = vmatpush1.bf16.msra.mxu0 %v2174
        %2187 = vmatprep.subr.bf16.mxu0 0
        %2188 = vmatpush1.bf16.msra.mxu0 %v2175
        %2189 = vmatprep.subr.bf16.mxu0 0
        %2190 = vmatpush1.bf16.msra.mxu0 %v2176
        %2191 = vmatprep.subr.bf16.mxu0 0
        %2192 = vmatpush1.bf16.msra.mxu0 %v2177
        %2193 = vmatprep.subr.bf16.mxu0 0
        %2194 = vmatpush1.bf16.msra.mxu0 0
        %2195 = vmatprep.subr.bf16.mxu0 0
        %2196 = vmatpush1.bf16.msra.mxu0 0
        %2197 = vmatprep.subr.bf16.mxu0 0
        %2198 = vmatpush1.bf16.msra.mxu0 0
        %2199 = vmatprep.subr.bf16.mxu0 0
        %2200 = vmatpush1.bf16.msra.mxu0 0
        %2201 = vmatprep.subr.bf16.mxu0 0
        %2202 = vmatpush1.bf16.msra.mxu0 0
        %2203 = vmatprep.subr.bf16.mxu0 0
        %2204 = vmatpush1.bf16.msra.mxu0 0
        %2205 = vmatprep.subr.bf16.mxu0 0
        %2206 = vmatpush1.bf16.msra.mxu0 0
        %2207 = vmatprep.subr.bf16.mxu0 0
        %2208 = vmatpush1.bf16.msra.mxu0 0
        %2209 = vmatprep.subr.bf16.mxu0 0
        %2210 = vmatpush1.bf16.msra.mxu0 0
        %2211 = vmatprep.subr.bf16.mxu0 0
        %2212 = vmatpush1.bf16.msra.mxu0 0
        %2213 = vmatprep.subr.bf16.mxu0 0
        %2214 = vmatpush1.bf16.msra.mxu0 0
        %2215 = vmatprep.subr.bf16.mxu0 0
        %2216 = vmatpush1.bf16.msra.mxu0 0
        %2217 = vmatprep.mubr.bf16.mxu0 0
        %2218 = vmatmul.mubr.bf16.gmra.mrb[0].mxu0 %v2183
        %v2219 = vpop.f32.mrb[0].mxu0
        %v2220 = vadd.f32 %v2156, %v2219
        %v2221 = vpop.f32.mrb[0].mxu0
        %v2222 = vpop.f32.mrb[0].mxu0
        %v2223 = vadd.f32 %v2156, %v2222
        %v2224 = vpop.f32.mrb[0].mxu0
        %2225 = vdwg.mxu0
        %v2226 = vmax.f32 %v2220, 0.0
        %v2227 = vmax.f32 %v2223, 0.0
        %v2228 = vpack.c.bf16 %v2227, %v2226
        %v2229 = vld [vmem:[%s812] sm:$0xf]
        %v2230 = vld [vmem:[%s812 + $0x4] sm:$0xf]
        %v2231 = vld [vmem:[%s812 + $0x8] sm:$0xf]
        %v2232 = vld [vmem:[%s812 + $0xc] sm:$0xf]
        %v2233 = vld [vmem:[%s812 + $0x10] sm:$0xf]
        %v2234 = vld [vmem:[%s812 + $0x14] sm:$0xf]
        %v2235 = vld [vmem:[%s812 + $0x18] sm:$0xf]
        %v2236 = vld [vmem:[%s812 + $0x1c] sm:$0xf]
        %v2237 = vld [vmem:[%s812 + $0x20] sm:$0xf]
        %v2238 = vld [vmem:[%s812 + $0x24] sm:$0xf]
        %v2239 = vld [vmem:[%s812 + $0x28] sm:$0xf]
        %v2240 = vld [vmem:[%s812 + $0x2c] sm:$0xf]
        %v2241 = vld [vmem:[%s812 + $0x30] sm:$0xf]
        %v2242 = vld [vmem:[%s812 + $0x34] sm:$0xf]
        %v2243 = vld [vmem:[%s812 + $0x38] sm:$0xf]
        %v2244 = vld [vmem:[%s812 + $0x3c] sm:$0xf]
        %v2245 = vld [vmem:[%s815] sm:$0x1]
        %v2247 = vlaneseq
        %v2248 = vshrl.u32 %v2247, 7
        %v2249 = vsub.s32 0, %v2248
        %v2250 = vrot.slane %v2245, %v2249
        %v2268 = vunpack.c.l.b16 %v2229
        %v2269 = vunpack.c.l.b16 %v2230
        %v2270 = vunpack.c.l.b16 %v2231
        %v2271 = vunpack.c.l.b16 %v2232
        %v2272 = vunpack.c.l.b16 %v2233
        %v2273 = vunpack.c.l.b16 %v2234
        %v2274 = vunpack.c.l.b16 %v2235
        %v2275 = vunpack.c.l.b16 %v2236
        %v2276 = vunpack.c.l.b16 %v2237
        %v2277 = vunpack.c.l.b16 %v2238
        %v2278 = vunpack.c.l.b16 %v2239
        %v2279 = vunpack.c.l.b16 %v2240
        %v2280 = vunpack.c.l.b16 %v2241
        %v2281 = vunpack.c.l.b16 %v2242
        %v2282 = vunpack.c.l.b16 %v2243
        %v2283 = vunpack.c.l.b16 %v2244
        %v2284 = vpack.c.b16 %v2269, %v2268
        %v2285 = vpack.c.b16 %v2271, %v2270
        %v2286 = vpack.c.b16 %v2273, %v2272
        %v2287 = vpack.c.b16 %v2275, %v2274
        %v2288 = vpack.c.b16 %v2277, %v2276
        %v2289 = vpack.c.b16 %v2279, %v2278
        %v2290 = vpack.c.b16 %v2281, %v2280
        %v2291 = vpack.c.b16 %v2283, %v2282
        %2300 = vmatprep.subr.bf16.mxu0 0
        %2301 = vmatpush1.bf16.msra.mxu0 %v2284
        %2302 = vmatprep.subr.bf16.mxu0 0
        %2303 = vmatpush1.bf16.msra.mxu0 %v2285
        %2304 = vmatprep.subr.bf16.mxu0 0
        %2305 = vmatpush1.bf16.msra.mxu0 %v2286
        %2306 = vmatprep.subr.bf16.mxu0 0
        %2307 = vmatpush1.bf16.msra.mxu0 %v2287
        %2308 = vmatprep.subr.bf16.mxu0 0
        %2309 = vmatpush1.bf16.msra.mxu0 %v2288
        %2310 = vmatprep.subr.bf16.mxu0 0
        %2311 = vmatpush1.bf16.msra.mxu0 %v2289
        %2312 = vmatprep.subr.bf16.mxu0 0
        %2313 = vmatpush1.bf16.msra.mxu0 %v2290
        %2314 = vmatprep.subr.bf16.mxu0 0
        %2315 = vmatpush1.bf16.msra.mxu0 %v2291
        %2316 = vmatprep.subr.bf16.mxu0 0
        %2317 = vmatpush1.bf16.msra.mxu0 0
        %2318 = vmatprep.subr.bf16.mxu0 0
        %2319 = vmatpush1.bf16.msra.mxu0 0
        %2320 = vmatprep.subr.bf16.mxu0 0
        %2321 = vmatpush1.bf16.msra.mxu0 0
        %2322 = vmatprep.subr.bf16.mxu0 0
        %2323 = vmatpush1.bf16.msra.mxu0 0
        %2324 = vmatprep.subr.bf16.mxu0 0
        %2325 = vmatpush1.bf16.msra.mxu0 0
        %2326 = vmatprep.subr.bf16.mxu0 0
        %2327 = vmatpush1.bf16.msra.mxu0 0
        %2328 = vmatprep.subr.bf16.mxu0 0
        %2329 = vmatpush1.bf16.msra.mxu0 0
        %2330 = vmatprep.subr.bf16.mxu0 0
        %2331 = vmatpush1.bf16.msra.mxu0 0
        %2332 = vmatprep.mubr.bf16.mxu0 0
        %2333 = vmatmul.mubr.bf16.gmra.mrb[0].mxu0 %v2228
        %v2334 = vpop.f32.mrb[0].mxu0
        %v2335 = vadd.f32 %v2250, %v2334
        %v2336 = vpop.f32.mrb[0].mxu0
        %v2337 = vpop.f32.mrb[0].mxu0
        %v2338 = vadd.f32 %v2250, %v2337
        %v2339 = vpop.f32.mrb[0].mxu0
        %2340 = vdwg.mxu0
        %v2341 = vadd.f32 %v2140, %v2335
        %v2342 = vadd.f32 %v2141, %v2338
        %v2343 = vld [vmem:[%s818] sm:$0x1]
        %v2344 = vld [vmem:[%s821] sm:$0x1]
        %v2345 = vsel %vm1017, %v2341, 0.0
        %2346 = vadd.xlane.f32.xlu0 %v2345
        %v2347 = vpop.xlane.xlu0 %2346
        %v2348 = vsel %vm1017, %v2342, 0.0
        %2349 = vadd.xlane.f32.xlu0 %v2348
        %v2350 = vpop.xlane.xlu0 %2349
        %v2351 = vmul.f32 %v2347, %v2105
        %v2352 = vmul.f32 %v2350, %v2105
        %v2353 = vsub.f32 %v2341, %v2351
        %v2354 = vsub.f32 %v2342, %v2352
        %v2355 = vmul.f32 %v2353, %v2353
        %v2356 = vmul.f32 %v2354, %v2354
        %v2357 = vsel %vm1017, %v2355, 0.0
        %2358 = vadd.xlane.f32.xlu0 %v2357
        %v2359 = vpop.xlane.xlu0 %2358
        %v2360 = vsel %vm1017, %v2356, 0.0
        %2361 = vadd.xlane.f32.xlu0 %v2360
        %v2362 = vpop.xlane.xlu0 %2361
        %v2363 = vmul.f32 %v2359, %v2105
        %v2364 = vmul.f32 %v2362, %v2105
        %v2365 = vadd.f32 %v2363, 1e-05
        %v2366 = vadd.f32 %v2364, 1e-05
        %v2367 = vrsqrt.pop %v2365
        %v2368 = vrsqrt.pop %v2366
        %v2369 = vmul.f32 %v2353, %v2367
        %v2370 = vmul.f32 %v2354, %v2368
        %v2372 = vlaneseq
        %v2373 = vshrl.u32 %v2372, 7
        %v2374 = vsub.s32 0, %v2373
        %v2375 = vrot.slane %v2343, %v2374
        %v2377 = vmul.f32 %v2369, %v2375
        %v2378 = vmul.f32 %v2370, %v2375
        %v2380 = vlaneseq
        %v2381 = vshrl.u32 %v2380, 7
        %v2382 = vsub.s32 0, %v2381
        %v2383 = vrot.slane %v2344, %v2382
        %v2385 = vadd.f32 %v2377, %v2383
        %v2386 = vadd.f32 %v2378, %v2383
        %2387 = vst.msk [vmem:[#allocation2] sm:$0xff] %vm1017, %v2385
        %2388 = vst.msk [vmem:[#allocation2 + $0x8] sm:$0xff] %vm1017, %v2386
        %p2389 = scmp.eq.s32.totalorder %s36, 1
        // Predicated region
        $region101: #{encoder_forward.1} parent=95 // pred_check
          %p2390 = pneg %p2389
        $region102: #{encoder_forward.1} parent=95 // pred_check_branch
          %2392 = sbr.rel (%p2390) target = $region104
        $region103: #{encoder_forward.1} parent=95 // pred_region
          %2393 = vst.msk [vmem:[#allocation3] sm:$0xff] %vm1017, %v2385
          %2394 = vst.msk [vmem:[#allocation3 + $0x8] sm:$0xff] %vm1017, %v2386
        $region104: #{encoder_forward.1} parent=95 // pred_fallthru
          _
        // Predicated region
        $region105: #{encoder_forward.1} parent=95 // pred_check
          %p2395 = pneg %p530
        $region106: #{encoder_forward.1} parent=95 // pred_check_branch
          %2397 = sbr.rel (%p2395) target = $region108
        $region107: #{encoder_forward.1} parent=95 // pred_region
          %s2398 = smul.u32 2, %s35
          %s2400 = ssub.s32 256, 256
          %2401 = vsyncadd [#allocation4], %s2400
          %s2402 = smul.addr %s2398, 128
          %s2403 = scalar_lea.hbm %s19, %s2402
          %s2404 = sshll.u32 [#allocation3], 4
          %s2405 = int_to_ptr.vmem [resolvable:$true] %s2404
          %2410 = dma.vmem_to_hbm [thread:$0]  %s2405, 256, %s2403, [#allocation4], 128, 128, 8
        $region108: #{encoder_forward.1} parent=95 // pred_fallthru
          _
        // Predicated region
        $region109: #{encoder_forward.1} parent=95 // pred_check
          %p2411 = pneg %p530
        $region110: #{encoder_forward.1} parent=95 // pred_check_branch
          %2413 = sbr.rel (%p2411) target = $region112
        $region111: #{encoder_forward.1} parent=95 // pred_region
          %2414 = dma.done [#allocation4], 256
        $region112: #{encoder_forward.1} parent=95 // pred_fallthru
          _
      $region96: #{encoder_forward.1} parent=5 // pred_fallthru
        _
      %p2415 = scmp.le.s32.totalorder 2, %s26
      // Predicated region
      $region113: #{encoder_forward.1} parent=5 // pred_check
        %p2416 = pneg %p2415
      $region114: #{encoder_forward.1} parent=5 // pred_check_branch
        %2418 = sbr.rel (%p2416) target = $region116
      $region115: #{encoder_forward.1} parent=5 // pred_region
        %s2419 = ssub.s32 %s26, 2
      $region116: #{encoder_forward.1} parent=5 // pred_fallthru
        _
    $region6: #{encoder_forward.1} parent=1 // loop_footer
      %s30 = sadd.s32 1, %s26
    $region7: #{encoder_forward.1} parent=1 // loop_footer_branch
      %25 = sbr.rel target = $region3
    $region8: #{encoder_forward.1} parent=1 // loop_exit
      _
    %2420 = vsyncpa [#allocation4], 1
    %s2421 = scalar_lea.sflag [#allocation4], 1
    %2422 = vsyncpa %s2421, 1

</llo_original>
